<compile_context>
chip_gen: v7x
topology: tpu7x:2x2x1
jax: 0.10.0
libtpu: 0.0.40
codegen_flags: <defaults>
</compile_context>

<pallas_src>
import jax
import jax.numpy as jnp
from jax.experimental import pallas as pl
from jax.experimental.pallas import tpu as pltpu

# small, module-consistent sizes (768 -> QLEN, 3500 -> D_MODEL, 2048 -> DFF, 92 -> ELEM)
N        = 2            # batch
QLEN     = 8            # query length (analog of 768)
D_MODEL  = 128          # d_model     (analog of 3500) -- lane-dense
NHEAD    = 4
HEAD_DIM = D_MODEL // NHEAD
DFF      = 256          # dim_feedforward (analog of 2048)
ELEM     = 92           # element feature dim (as in the module)
LN_EPS   = 1e-5
ROWS     = QLEN * N     # (l, b)-flattened sequence x batch rows


def _layer_norm(x, gamma, beta, eps=LN_EPS):
    mu = jnp.mean(x, axis=-1, keepdims=True)
    var = jnp.mean(jnp.square(x - mu), axis=-1, keepdims=True)
    return (x - mu) * jax.lax.rsqrt(var + eps) * gamma + beta


# --------------------------- fused Pallas kernel -----------------------------

def cross_attn_fused_kernel(elem_ref, src_ref, pos_ref,
                            wmap_ref, bmap_ref,
                            wq_ref, wkv_ref, bkv_ref, wo_ref,
                            w1_ref, b1_ref, w2_ref,
                            vecs_ref, out_ref):
    f32 = jnp.float32

    # ---- element_map: Linear(ELEM -> QLEN*D) + ReLU (Dropout(0.5) identity, eval) ----
    qflat = jnp.dot(elem_ref[...], wmap_ref[...], preferred_element_type=f32)
    qflat = jnp.maximum(qflat + bmap_ref[...], 0.0)                # (N, QLEN*D)

    # PyTorch .view(QLEN, -1, D) is a row-major reflow of the same buffer; in the
    # (ROWS, D) layout (row r <-> (l, b) with r = l*N + b) that buffer's row r is
    # qflat[r // QLEN, (r % QLEN)*D : (r % QLEN + 1)*D].  Built with aligned
    # 128-lane slices + sublane concat (guaranteed-lowerable, tiny copies).
    q2 = jnp.concatenate(
        [qflat[n:n + 1, m * D_MODEL:(m + 1) * D_MODEL]
         for n in range(N) for m in range(QLEN)], axis=0)          # (ROWS, D)

    src2d = src_ref[...]                                           # (ROWS, D), rows (l, b)
    kv2d = src2d + pos_ref[...]                                    # with_pos_embed

    vecs = vecs_ref[...]                                           # (8, D) packed slab
    bq, bo, b2 = vecs[0:1, :], vecs[1:2, :], vecs[2:3, :]          # bq is pre-scaled
    g1, be1, g2, be2 = vecs[3:4, :], vecs[4:5, :], vecs[5:6, :], vecs[6:7, :]

    # ---- attention in-projections (K and V fused into one matmul) ----
    # Wq / bq already carry the 1/sqrt(HEAD_DIM) softmax scale (folded on host).
    Q = jnp.dot(q2, wq_ref[...], preferred_element_type=f32) + bq          # (ROWS, D)
    KV = jnp.dot(kv2d, wkv_ref[...], preferred_element_type=f32) + bkv_ref[...]
    K = KV[:, :D_MODEL]
    V = KV[:, D_MODEL:]

    # ---- multi-head attention; batch folded into rows, cross-batch pairs masked ----
    # Additive mask built once (0 for same-batch pairs, -1e30 otherwise).
    row_b = jax.lax.broadcasted_iota(jnp.int32, (ROWS, ROWS), 0) % N
    col_b = jax.lax.broadcasted_iota(jnp.int32, (ROWS, ROWS), 1) % N
    mask_bias = jnp.where(row_b == col_b, 0.0, -1e30).astype(f32)

    heads = []
    for h in range(NHEAD):                                         # static unroll
        lo = h * HEAD_DIM
        Qh = Q[:, lo:lo + HEAD_DIM]                                # already scaled
        Kh = K[:, lo:lo + HEAD_DIM]
        Vh = V[:, lo:lo + HEAD_DIM]
        s = jax.lax.dot_general(Qh, Kh, (((1,), (1,)), ((), ())),
                                preferred_element_type=f32)        # (ROWS, ROWS)
        s = s + mask_bias                                          # per-batch softmax
        s = s - jnp.max(s, axis=-1, keepdims=True)
        e = jnp.exp(s)
        p = e * pl.reciprocal(jnp.sum(e, axis=-1, keepdims=True), approx=True)
        heads.append(jnp.dot(p, Vh, preferred_element_type=f32))
    o_cat = jnp.concatenate(heads, axis=-1)                        # (ROWS, D)
    attn = jnp.dot(o_cat, wo_ref[...], preferred_element_type=f32) + bo

    # ---- residual + LayerNorm1 (dropout1 identity) ----
    x = _layer_norm(src2d + attn, g1, be1)

    # ---- FFN: linear2(relu(linear1(x)))  (dropout / dropout2 identity) ----
    h1 = jnp.maximum(
        jnp.dot(x, w1_ref[...], preferred_element_type=f32) + b1_ref[...], 0.0)
    y = jnp.dot(h1, w2_ref[...], preferred_element_type=f32) + b2

    # ---- residual + LayerNorm2 ----
    out_ref[...] = _layer_norm(x + y, g2, be2)


# --------------------------- wrapper ------------------------------------------

def prepare_params(p):
    """One-time host-side packing: pre-transposed weights, fused K/V, packed vectors,
    and the softmax scale folded into the Q projection."""
    scale = 1.0 / (HEAD_DIM ** 0.5)
    vecs = jnp.stack([p['bq'] * scale, p['bo'], p['b2'],
                      p['g1'], p['be1'], p['g2'], p['be2'],
                      jnp.zeros((D_MODEL,), jnp.float32)], axis=0)         # (8, D)
    return {
        'wmap_t': jnp.asarray(p['wmap'].T),                                # (ELEM, QLEN*D)
        'bmap': p['bmap'][None, :],                                        # (1, QLEN*D)
        'wq_t': jnp.asarray(p['wq'].T) * scale,                            # (D, D), pre-scaled
        'wkv_t': jnp.concatenate([p['wk'].T, p['wv'].T], axis=1),          # (D, 2D)
        'bkv': jnp.concatenate([p['bk'], p['bv']])[None, :],               # (1, 2D)
        'wo_t': jnp.asarray(p['wo'].T),                                    # (D, D)
        'w1_t': jnp.asarray(p['w1'].T),                                    # (D, DFF)
        'b1': p['b1'][None, :],                                            # (1, DFF)
        'w2_t': jnp.asarray(p['w2'].T),                                    # (DFF, D)
        'vecs': vecs,                                                      # (8, D)
    }


@jax.jit
def cross_attn_layer_pallas(src, pos, elem, pp):
    # free row-major reshapes: seq-first (L, N, D) <-> (L*N, D); no transposes.
    src2d = src.reshape(ROWS, D_MODEL)
    pos2d = pos.reshape(ROWS, D_MODEL)

    vmem = pl.BlockSpec(memory_space=pltpu.MemorySpace.VMEM)
    out2d = pl.pallas_call(
        cross_attn_fused_kernel,
        out_shape=jax.ShapeDtypeStruct((ROWS, D_MODEL), jnp.float32),
        in_specs=[vmem] * 13,
        out_specs=vmem,
    )(elem, src2d, pos2d,
      pp['wmap_t'], pp['bmap'],
      pp['wq_t'], pp['wkv_t'], pp['bkv'], pp['wo_t'],
      pp['w1_t'], pp['b1'], pp['w2_t'],
      pp['vecs'])
    return out2d.reshape(QLEN, N, D_MODEL)                # back to (L, N, D)


# --------------------------- pure-JAX reference --------------------------------

def cross_attn_layer_ref(src, pos, elem, p):
    q = jnp.maximum(elem @ p['wmap'].T + p['bmap'], 0.0)
    q = q.reshape(QLEN, -1, D_MODEL)
    kv = src + pos
    L, n, E = kv.shape

    Q = q @ p['wq'].T + p['bq']
    K = kv @ p['wk'].T + p['bk']
    V = kv @ p['wv'].T + p['bv']
    Qh = Q.reshape(QLEN, n, NHEAD, HEAD_DIM).transpose(1, 2, 0, 3)
    Kh = K.reshape(L, n, NHEAD, HEAD_DIM).transpose(1, 2, 0, 3)
    Vh = V.reshape(L, n, NHEAD, HEAD_DIM).transpose(1, 2, 0, 3)
    scores = jnp.einsum('nhqd,nhkd->nhqk', Qh, Kh) / (HEAD_DIM ** 0.5)
    attn = jax.nn.softmax(scores, axis=-1)
    O = jnp.einsum('nhqk,nhkd->nhqd', attn, Vh)
    O = O.transpose(2, 0, 1, 3).reshape(QLEN, n, E)
    src2 = O @ p['wo'].T + p['bo']

    x = _layer_norm(src + src2, p['g1'], p['be1'])
    y = jnp.maximum(x @ p['w1'].T + p['b1'], 0.0) @ p['w2'].T + p['b2']
    x = _layer_norm(x + y, p['g2'], p['be2'])
    return x


# --------------------------- main ----------------------------------------------

if __name__ == "__main__":
    key = jax.random.PRNGKey(0)
    ks = jax.random.split(key, 24)

    def rnd(k, shape, scale=0.1):
        return scale * jax.random.normal(k, shape, jnp.float32)

    # parameters (PyTorch convention: Linear weight is (out_features, in_features))
    params = {
        'wmap': rnd(ks[0], (QLEN * D_MODEL, ELEM)), 'bmap': rnd(ks[1], (QLEN * D_MODEL,)),
        'wq': rnd(ks[2], (D_MODEL, D_MODEL)), 'bq': rnd(ks[3], (D_MODEL,)),
        'wk': rnd(ks[4], (D_MODEL, D_MODEL)), 'bk': rnd(ks[5], (D_MODEL,)),
        'wv': rnd(ks[6], (D_MODEL, D_MODEL)), 'bv': rnd(ks[7], (D_MODEL,)),
        'wo': rnd(ks[8], (D_MODEL, D_MODEL)), 'bo': rnd(ks[9], (D_MODEL,)),
        'w1': rnd(ks[10], (DFF, D_MODEL)), 'b1': rnd(ks[11], (DFF,)),
        'w2': rnd(ks[12], (D_MODEL, DFF)), 'b2': rnd(ks[13], (D_MODEL,)),
        'g1': jnp.ones((D_MODEL,), jnp.float32), 'be1': jnp.zeros((D_MODEL,), jnp.float32),
        'g2': jnp.ones((D_MODEL,), jnp.float32), 'be2': jnp.zeros((D_MODEL,), jnp.float32),
    }

    # inputs (PyTorch seq-first convention for src/pos)
    src = rnd(ks[20], (QLEN, N, D_MODEL), scale=0.5)
    pos = rnd(ks[21], (QLEN, N, D_MODEL), scale=0.5)
    elem = rnd(ks[22], (N, ELEM), scale=0.5)

    pp = prepare_params(params)          # host-side packing, once (not per call)

    out = cross_attn_layer_pallas(src, pos, elem, pp)
    out = jax.block_until_ready(out)

    ref = cross_attn_layer_ref(src, pos, elem, params)
    assert out.shape == (QLEN, N, D_MODEL)
    assert jnp.allclose(out, ref, rtol=2e-2, atol=2e-2), (
        f"max abs diff {float(jnp.max(jnp.abs(out - ref)))}")

    # TODO(synk): training-time Dropout masks (p=0.5 in element_map, p=0.1 elsewhere)
    # are not implemented (eval-mode identity semantics only).
    print("KERNEL_OK")
</pallas_src>

<mosaic_0001>
module attributes {stable_mosaic.version = 11 : i64} {
  func.func @cross_attn_fused_kernel(%arg0: memref<2x92xf32, #tpu.memory_space<vmem>>, %arg1: memref<16x128xf32, #tpu.memory_space<vmem>>, %arg2: memref<16x128xf32, #tpu.memory_space<vmem>>, %arg3: memref<92x1024xf32, #tpu.memory_space<vmem>>, %arg4: memref<1x1024xf32, #tpu.memory_space<vmem>>, %arg5: memref<128x128xf32, #tpu.memory_space<vmem>>, %arg6: memref<128x256xf32, #tpu.memory_space<vmem>>, %arg7: memref<1x256xf32, #tpu.memory_space<vmem>>, %arg8: memref<128x128xf32, #tpu.memory_space<vmem>>, %arg9: memref<128x256xf32, #tpu.memory_space<vmem>>, %arg10: memref<1x256xf32, #tpu.memory_space<vmem>>, %arg11: memref<256x128xf32, #tpu.memory_space<vmem>>, %arg12: memref<8x128xf32, #tpu.memory_space<vmem>>, %arg13: memref<16x128xf32, #tpu.memory_space<vmem>>) attributes {dimension_semantics = [], scalar_prefetch = 0 : i64, scratch_operands = 0 : i64, tpu.core_type = #tpu.core_type<tc>} {
    %c0 = arith.constant 0 : index
    %c0_0 = arith.constant 0 : index
    %0 = vector.load %arg0[%c0, %c0_0] : memref<2x92xf32, #tpu.memory_space<vmem>>, vector<2x92xf32>
    %c0_1 = arith.constant 0 : index
    %c0_2 = arith.constant 0 : index
    %1 = vector.load %arg3[%c0_1, %c0_2] : memref<92x1024xf32, #tpu.memory_space<vmem>>, vector<92x1024xf32>
    %cst = arith.constant dense<0.000000e+00> : vector<2x1024xf32>
    %2 = tpu.matmul %0, %1, %cst {dimension_numbers = #tpu.dot_dimension_numbers<[1], [0], [0], [1], [0, 0, 1, 1], [], []>} : vector<2x92xf32>, vector<92x1024xf32>, vector<2x1024xf32> -> vector<2x1024xf32>
    %c0_3 = arith.constant 0 : index
    %c0_4 = arith.constant 0 : index
    %3 = vector.load %arg4[%c0_3, %c0_4] : memref<1x1024xf32, #tpu.memory_space<vmem>>, vector<1x1024xf32>
    %4 = vector.broadcast %3 : vector<1x1024xf32> to vector<2x1024xf32>
    %5 = arith.addf %2, %4 : vector<2x1024xf32>
    %cst_5 = arith.constant 0.000000e+00 : f32
    %6 = vector.broadcast %cst_5 : f32 to vector<2x1024xf32>
    %7 = arith.maximumf %5, %6 : vector<2x1024xf32>
    %8 = vector.extract_strided_slice %7 {offsets = [0, 0], sizes = [1, 128], strides = [1, 1]} : vector<2x1024xf32> to vector<1x128xf32>
    %9 = vector.extract_strided_slice %7 {offsets = [0, 128], sizes = [1, 128], strides = [1, 1]} : vector<2x1024xf32> to vector<1x128xf32>
    %10 = vector.extract_strided_slice %7 {offsets = [0, 256], sizes = [1, 128], strides = [1, 1]} : vector<2x1024xf32> to vector<1x128xf32>
    %11 = vector.extract_strided_slice %7 {offsets = [0, 384], sizes = [1, 128], strides = [1, 1]} : vector<2x1024xf32> to vector<1x128xf32>
    %12 = vector.extract_strided_slice %7 {offsets = [0, 512], sizes = [1, 128], strides = [1, 1]} : vector<2x1024xf32> to vector<1x128xf32>
    %13 = vector.extract_strided_slice %7 {offsets = [0, 640], sizes = [1, 128], strides = [1, 1]} : vector<2x1024xf32> to vector<1x128xf32>
    %14 = vector.extract_strided_slice %7 {offsets = [0, 768], sizes = [1, 128], strides = [1, 1]} : vector<2x1024xf32> to vector<1x128xf32>
    %15 = vector.extract_strided_slice %7 {offsets = [0, 896], sizes = [1, 128], strides = [1, 1]} : vector<2x1024xf32> to vector<1x128xf32>
    %16 = vector.extract_strided_slice %7 {offsets = [1, 0], sizes = [1, 128], strides = [1, 1]} : vector<2x1024xf32> to vector<1x128xf32>
    %17 = vector.extract_strided_slice %7 {offsets = [1, 128], sizes = [1, 128], strides = [1, 1]} : vector<2x1024xf32> to vector<1x128xf32>
    %18 = vector.extract_strided_slice %7 {offsets = [1, 256], sizes = [1, 128], strides = [1, 1]} : vector<2x1024xf32> to vector<1x128xf32>
    %19 = vector.extract_strided_slice %7 {offsets = [1, 384], sizes = [1, 128], strides = [1, 1]} : vector<2x1024xf32> to vector<1x128xf32>
    %20 = vector.extract_strided_slice %7 {offsets = [1, 512], sizes = [1, 128], strides = [1, 1]} : vector<2x1024xf32> to vector<1x128xf32>
    %21 = vector.extract_strided_slice %7 {offsets = [1, 640], sizes = [1, 128], strides = [1, 1]} : vector<2x1024xf32> to vector<1x128xf32>
    %22 = vector.extract_strided_slice %7 {offsets = [1, 768], sizes = [1, 128], strides = [1, 1]} : vector<2x1024xf32> to vector<1x128xf32>
    %23 = vector.extract_strided_slice %7 {offsets = [1, 896], sizes = [1, 128], strides = [1, 1]} : vector<2x1024xf32> to vector<1x128xf32>
    %24 = tpu.concatenate %8, %9, %10, %11, %12, %13, %14, %15, %16, %17, %18, %19, %20, %21, %22, %23 in 0 : vector<1x128xf32>, vector<1x128xf32>, vector<1x128xf32>, vector<1x128xf32>, vector<1x128xf32>, vector<1x128xf32>, vector<1x128xf32>, vector<1x128xf32>, vector<1x128xf32>, vector<1x128xf32>, vector<1x128xf32>, vector<1x128xf32>, vector<1x128xf32>, vector<1x128xf32>, vector<1x128xf32>, vector<1x128xf32> -> vector<16x128xf32>
    %c0_6 = arith.constant 0 : index
    %c0_7 = arith.constant 0 : index
    %25 = vector.load %arg1[%c0_6, %c0_7] : memref<16x128xf32, #tpu.memory_space<vmem>>, vector<16x128xf32>
    %c0_8 = arith.constant 0 : index
    %c0_9 = arith.constant 0 : index
    %26 = vector.load %arg2[%c0_8, %c0_9] : memref<16x128xf32, #tpu.memory_space<vmem>>, vector<16x128xf32>
    %27 = arith.addf %25, %26 : vector<16x128xf32>
    %c0_10 = arith.constant 0 : index
    %c0_11 = arith.constant 0 : index
    %28 = vector.load %arg12[%c0_10, %c0_11] : memref<8x128xf32, #tpu.memory_space<vmem>>, vector<8x128xf32>
    %29 = vector.extract_strided_slice %28 {offsets = [0, 0], sizes = [1, 128], strides = [1, 1]} : vector<8x128xf32> to vector<1x128xf32>
    %30 = vector.extract_strided_slice %28 {offsets = [1, 0], sizes = [1, 128], strides = [1, 1]} : vector<8x128xf32> to vector<1x128xf32>
    %31 = vector.extract_strided_slice %28 {offsets = [2, 0], sizes = [1, 128], strides = [1, 1]} : vector<8x128xf32> to vector<1x128xf32>
    %32 = vector.extract_strided_slice %28 {offsets = [3, 0], sizes = [1, 128], strides = [1, 1]} : vector<8x128xf32> to vector<1x128xf32>
    %33 = vector.extract_strided_slice %28 {offsets = [4, 0], sizes = [1, 128], strides = [1, 1]} : vector<8x128xf32> to vector<1x128xf32>
    %34 = vector.extract_strided_slice %28 {offsets = [5, 0], sizes = [1, 128], strides = [1, 1]} : vector<8x128xf32> to vector<1x128xf32>
    %35 = vector.extract_strided_slice %28 {offsets = [6, 0], sizes = [1, 128], strides = [1, 1]} : vector<8x128xf32> to vector<1x128xf32>
    %c0_12 = arith.constant 0 : index
    %c0_13 = arith.constant 0 : index
    %36 = vector.load %arg5[%c0_12, %c0_13] : memref<128x128xf32, #tpu.memory_space<vmem>>, vector<128x128xf32>
    %cst_14 = arith.constant dense<0.000000e+00> : vector<16x128xf32>
    %37 = tpu.matmul %24, %36, %cst_14 {dimension_numbers = #tpu.dot_dimension_numbers<[1], [0], [0], [1], [0, 0, 1, 1], [], []>} : vector<16x128xf32>, vector<128x128xf32>, vector<16x128xf32> -> vector<16x128xf32>
    %38 = vector.broadcast %29 : vector<1x128xf32> to vector<16x128xf32>
    %39 = arith.addf %37, %38 : vector<16x128xf32>
    %c0_15 = arith.constant 0 : index
    %c0_16 = arith.constant 0 : index
    %40 = vector.load %arg6[%c0_15, %c0_16] : memref<128x256xf32, #tpu.memory_space<vmem>>, vector<128x256xf32>
    %cst_17 = arith.constant dense<0.000000e+00> : vector<16x256xf32>
    %41 = tpu.matmul %27, %40, %cst_17 {dimension_numbers = #tpu.dot_dimension_numbers<[1], [0], [0], [1], [0, 0, 1, 1], [], []>} : vector<16x128xf32>, vector<128x256xf32>, vector<16x256xf32> -> vector<16x256xf32>
    %c0_18 = arith.constant 0 : index
    %c0_19 = arith.constant 0 : index
    %42 = vector.load %arg7[%c0_18, %c0_19] : memref<1x256xf32, #tpu.memory_space<vmem>>, vector<1x256xf32>
    %43 = vector.broadcast %42 : vector<1x256xf32> to vector<16x256xf32>
    %44 = arith.addf %41, %43 : vector<16x256xf32>
    %45 = vector.extract_strided_slice %44 {offsets = [0, 0], sizes = [16, 128], strides = [1, 1]} : vector<16x256xf32> to vector<16x128xf32>
    %46 = vector.extract_strided_slice %44 {offsets = [0, 128], sizes = [16, 128], strides = [1, 1]} : vector<16x256xf32> to vector<16x128xf32>
    %47 = tpu.iota {dimensions = array<i32: 0>} : vector<16x16xi32>
    %c2_i32 = arith.constant 2 : i32
    %c0_i32 = arith.constant 0 : i32
    %48 = arith.cmpi eq, %c2_i32, %c0_i32 : i32
    %c1_i32 = arith.constant 1 : i32
    %49 = arith.select %48, %c1_i32, %c2_i32 : i32
    %50 = vector.broadcast %49 : i32 to vector<16x16xi32>
    %51 = arith.remsi %47, %50 : vector<16x16xi32>
    %c0_i32_20 = arith.constant 0 : i32
    %52 = vector.broadcast %c0_i32_20 : i32 to vector<16x16xi32>
    %53 = arith.cmpi ne, %51, %52 : vector<16x16xi32>
    %c0_i32_21 = arith.constant 0 : i32
    %54 = vector.broadcast %c0_i32_21 : i32 to vector<16x16xi32>
    %55 = arith.cmpi slt, %51, %54 : vector<16x16xi32>
    %c0_i32_22 = arith.constant 0 : i32
    %56 = arith.cmpi slt, %49, %c0_i32_22 : i32
    %57 = vector.broadcast %56 : i1 to vector<16x16xi1>
    %58 = vector.broadcast %57 : vector<16x16xi1> to vector<16x16xi1>
    %59 = arith.xori %55, %58 : vector<16x16xi1>
    %60 = arith.andi %59, %53 : vector<16x16xi1>
    %61 = vector.broadcast %49 : i32 to vector<16x16xi32>
    %62 = arith.addi %51, %61 : vector<16x16xi32>
    %63 = arith.select %60, %62, %51 : vector<16x16xi1>, vector<16x16xi32>
    %64 = tpu.iota {dimensions = array<i32: 1>} : vector<16x16xi32>
    %c2_i32_23 = arith.constant 2 : i32
    %c0_i32_24 = arith.constant 0 : i32
    %65 = arith.cmpi eq, %c2_i32_23, %c0_i32_24 : i32
    %c1_i32_25 = arith.constant 1 : i32
    %66 = arith.select %65, %c1_i32_25, %c2_i32_23 : i32
    %67 = vector.broadcast %66 : i32 to vector<16x16xi32>
    %68 = arith.remsi %64, %67 : vector<16x16xi32>
    %c0_i32_26 = arith.constant 0 : i32
    %69 = vector.broadcast %c0_i32_26 : i32 to vector<16x16xi32>
    %70 = arith.cmpi ne, %68, %69 : vector<16x16xi32>
    %c0_i32_27 = arith.constant 0 : i32
    %71 = vector.broadcast %c0_i32_27 : i32 to vector<16x16xi32>
    %72 = arith.cmpi slt, %68, %71 : vector<16x16xi32>
    %c0_i32_28 = arith.constant 0 : i32
    %73 = arith.cmpi slt, %66, %c0_i32_28 : i32
    %74 = vector.broadcast %73 : i1 to vector<16x16xi1>
    %75 = vector.broadcast %74 : vector<16x16xi1> to vector<16x16xi1>
    %76 = arith.xori %72, %75 : vector<16x16xi1>
    %77 = arith.andi %76, %70 : vector<16x16xi1>
    %78 = vector.broadcast %66 : i32 to vector<16x16xi32>
    %79 = arith.addi %68, %78 : vector<16x16xi32>
    %80 = arith.select %77, %79, %68 : vector<16x16xi1>, vector<16x16xi32>
    %81 = arith.cmpi eq, %63, %80 : vector<16x16xi32>
    %cst_29 = arith.constant 0.000000e+00 : f32
    %cst_30 = arith.constant -1.000000e+30 : f32
    %82 = vector.broadcast %cst_29 : f32 to vector<16x16xf32>
    %83 = vector.broadcast %cst_30 : f32 to vector<16x16xf32>
    %84 = arith.select %81, %82, %83 : vector<16x16xi1>, vector<16x16xf32>
    %85 = vector.extract_strided_slice %39 {offsets = [0, 0], sizes = [16, 32], strides = [1, 1]} : vector<16x128xf32> to vector<16x32xf32>
    %86 = vector.extract_strided_slice %45 {offsets = [0, 0], sizes = [16, 32], strides = [1, 1]} : vector<16x128xf32> to vector<16x32xf32>
    %87 = vector.extract_strided_slice %46 {offsets = [0, 0], sizes = [16, 32], strides = [1, 1]} : vector<16x128xf32> to vector<16x32xf32>
    %cst_31 = arith.constant dense<0.000000e+00> : vector<16x16xf32>
    %88 = tpu.matmul %85, %86, %cst_31 {dimension_numbers = #tpu.dot_dimension_numbers<[1], [1], [0], [0], [0, 0, 1, 0], [], []>} : vector<16x32xf32>, vector<16x32xf32>, vector<16x16xf32> -> vector<16x16xf32>
    %89 = arith.addf %88, %84 : vector<16x16xf32>
    %cst_32 = arith.constant dense<0xFF800000> : vector<16xf32>
    %90 = vector.multi_reduction <maximumf>, %89, %cst_32 [1] : vector<16x16xf32> to vector<16xf32>
    %91 = vector.shape_cast %90 : vector<16xf32> to vector<16x1xf32>
    %92 = vector.broadcast %91 : vector<16x1xf32> to vector<16x16xf32>
    %93 = arith.subf %89, %92 : vector<16x16xf32>
    %94 = math.exp %93 : vector<16x16xf32>
    %cst_33 = arith.constant dense<0.000000e+00> : vector<16xf32>
    %95 = vector.multi_reduction <add>, %94, %cst_33 [1] : vector<16x16xf32> to vector<16xf32>
    %96 = vector.shape_cast %95 : vector<16xf32> to vector<16x1xf32>
    %97 = tpu.reciprocal %96 {approx = true} : vector<16x1xf32> -> vector<16x1xf32>
    %98 = vector.broadcast %97 : vector<16x1xf32> to vector<16x16xf32>
    %99 = arith.mulf %94, %98 : vector<16x16xf32>
    %cst_34 = arith.constant dense<0.000000e+00> : vector<16x32xf32>
    %100 = tpu.matmul %99, %87, %cst_34 {dimension_numbers = #tpu.dot_dimension_numbers<[1], [0], [0], [1], [0, 0, 1, 1], [], []>} : vector<16x16xf32>, vector<16x32xf32>, vector<16x32xf32> -> vector<16x32xf32>
    %101 = vector.extract_strided_slice %39 {offsets = [0, 32], sizes = [16, 32], strides = [1, 1]} : vector<16x128xf32> to vector<16x32xf32>
    %102 = vector.extract_strided_slice %45 {offsets = [0, 32], sizes = [16, 32], strides = [1, 1]} : vector<16x128xf32> to vector<16x32xf32>
    %103 = vector.extract_strided_slice %46 {offsets = [0, 32], sizes = [16, 32], strides = [1, 1]} : vector<16x128xf32> to vector<16x32xf32>
    %cst_35 = arith.constant dense<0.000000e+00> : vector<16x16xf32>
    %104 = tpu.matmul %101, %102, %cst_35 {dimension_numbers = #tpu.dot_dimension_numbers<[1], [1], [0], [0], [0, 0, 1, 0], [], []>} : vector<16x32xf32>, vector<16x32xf32>, vector<16x16xf32> -> vector<16x16xf32>
    %105 = arith.addf %104, %84 : vector<16x16xf32>
    %cst_36 = arith.constant dense<0xFF800000> : vector<16xf32>
    %106 = vector.multi_reduction <maximumf>, %105, %cst_36 [1] : vector<16x16xf32> to vector<16xf32>
    %107 = vector.shape_cast %106 : vector<16xf32> to vector<16x1xf32>
    %108 = vector.broadcast %107 : vector<16x1xf32> to vector<16x16xf32>
    %109 = arith.subf %105, %108 : vector<16x16xf32>
    %110 = math.exp %109 : vector<16x16xf32>
    %cst_37 = arith.constant dense<0.000000e+00> : vector<16xf32>
    %111 = vector.multi_reduction <add>, %110, %cst_37 [1] : vector<16x16xf32> to vector<16xf32>
    %112 = vector.shape_cast %111 : vector<16xf32> to vector<16x1xf32>
    %113 = tpu.reciprocal %112 {approx = true} : vector<16x1xf32> -> vector<16x1xf32>
    %114 = vector.broadcast %113 : vector<16x1xf32> to vector<16x16xf32>
    %115 = arith.mulf %110, %114 : vector<16x16xf32>
    %cst_38 = arith.constant dense<0.000000e+00> : vector<16x32xf32>
    %116 = tpu.matmul %115, %103, %cst_38 {dimension_numbers = #tpu.dot_dimension_numbers<[1], [0], [0], [1], [0, 0, 1, 1], [], []>} : vector<16x16xf32>, vector<16x32xf32>, vector<16x32xf32> -> vector<16x32xf32>
    %117 = vector.extract_strided_slice %39 {offsets = [0, 64], sizes = [16, 32], strides = [1, 1]} : vector<16x128xf32> to vector<16x32xf32>
    %118 = vector.extract_strided_slice %45 {offsets = [0, 64], sizes = [16, 32], strides = [1, 1]} : vector<16x128xf32> to vector<16x32xf32>
    %119 = vector.extract_strided_slice %46 {offsets = [0, 64], sizes = [16, 32], strides = [1, 1]} : vector<16x128xf32> to vector<16x32xf32>
    %cst_39 = arith.constant dense<0.000000e+00> : vector<16x16xf32>
    %120 = tpu.matmul %117, %118, %cst_39 {dimension_numbers = #tpu.dot_dimension_numbers<[1], [1], [0], [0], [0, 0, 1, 0], [], []>} : vector<16x32xf32>, vector<16x32xf32>, vector<16x16xf32> -> vector<16x16xf32>
    %121 = arith.addf %120, %84 : vector<16x16xf32>
    %cst_40 = arith.constant dense<0xFF800000> : vector<16xf32>
    %122 = vector.multi_reduction <maximumf>, %121, %cst_40 [1] : vector<16x16xf32> to vector<16xf32>
    %123 = vector.shape_cast %122 : vector<16xf32> to vector<16x1xf32>
    %124 = vector.broadcast %123 : vector<16x1xf32> to vector<16x16xf32>
    %125 = arith.subf %121, %124 : vector<16x16xf32>
    %126 = math.exp %125 : vector<16x16xf32>
    %cst_41 = arith.constant dense<0.000000e+00> : vector<16xf32>
    %127 = vector.multi_reduction <add>, %126, %cst_41 [1] : vector<16x16xf32> to vector<16xf32>
    %128 = vector.shape_cast %127 : vector<16xf32> to vector<16x1xf32>
    %129 = tpu.reciprocal %128 {approx = true} : vector<16x1xf32> -> vector<16x1xf32>
    %130 = vector.broadcast %129 : vector<16x1xf32> to vector<16x16xf32>
    %131 = arith.mulf %126, %130 : vector<16x16xf32>
    %cst_42 = arith.constant dense<0.000000e+00> : vector<16x32xf32>
    %132 = tpu.matmul %131, %119, %cst_42 {dimension_numbers = #tpu.dot_dimension_numbers<[1], [0], [0], [1], [0, 0, 1, 1], [], []>} : vector<16x16xf32>, vector<16x32xf32>, vector<16x32xf32> -> vector<16x32xf32>
    %133 = vector.extract_strided_slice %39 {offsets = [0, 96], sizes = [16, 32], strides = [1, 1]} : vector<16x128xf32> to vector<16x32xf32>
    %134 = vector.extract_strided_slice %45 {offsets = [0, 96], sizes = [16, 32], strides = [1, 1]} : vector<16x128xf32> to vector<16x32xf32>
    %135 = vector.extract_strided_slice %46 {offsets = [0, 96], sizes = [16, 32], strides = [1, 1]} : vector<16x128xf32> to vector<16x32xf32>
    %cst_43 = arith.constant dense<0.000000e+00> : vector<16x16xf32>
    %136 = tpu.matmul %133, %134, %cst_43 {dimension_numbers = #tpu.dot_dimension_numbers<[1], [1], [0], [0], [0, 0, 1, 0], [], []>} : vector<16x32xf32>, vector<16x32xf32>, vector<16x16xf32> -> vector<16x16xf32>
    %137 = arith.addf %136, %84 : vector<16x16xf32>
    %cst_44 = arith.constant dense<0xFF800000> : vector<16xf32>
    %138 = vector.multi_reduction <maximumf>, %137, %cst_44 [1] : vector<16x16xf32> to vector<16xf32>
    %139 = vector.shape_cast %138 : vector<16xf32> to vector<16x1xf32>
    %140 = vector.broadcast %139 : vector<16x1xf32> to vector<16x16xf32>
    %141 = arith.subf %137, %140 : vector<16x16xf32>
    %142 = math.exp %141 : vector<16x16xf32>
    %cst_45 = arith.constant dense<0.000000e+00> : vector<16xf32>
    %143 = vector.multi_reduction <add>, %142, %cst_45 [1] : vector<16x16xf32> to vector<16xf32>
    %144 = vector.shape_cast %143 : vector<16xf32> to vector<16x1xf32>
    %145 = tpu.reciprocal %144 {approx = true} : vector<16x1xf32> -> vector<16x1xf32>
    %146 = vector.broadcast %145 : vector<16x1xf32> to vector<16x16xf32>
    %147 = arith.mulf %142, %146 : vector<16x16xf32>
    %cst_46 = arith.constant dense<0.000000e+00> : vector<16x32xf32>
    %148 = tpu.matmul %147, %135, %cst_46 {dimension_numbers = #tpu.dot_dimension_numbers<[1], [0], [0], [1], [0, 0, 1, 1], [], []>} : vector<16x16xf32>, vector<16x32xf32>, vector<16x32xf32> -> vector<16x32xf32>
    %149 = tpu.concatenate %100, %116, %132, %148 in 1 : vector<16x32xf32>, vector<16x32xf32>, vector<16x32xf32>, vector<16x32xf32> -> vector<16x128xf32>
    %c0_47 = arith.constant 0 : index
    %c0_48 = arith.constant 0 : index
    %150 = vector.load %arg8[%c0_47, %c0_48] : memref<128x128xf32, #tpu.memory_space<vmem>>, vector<128x128xf32>
    %cst_49 = arith.constant dense<0.000000e+00> : vector<16x128xf32>
    %151 = tpu.matmul %149, %150, %cst_49 {dimension_numbers = #tpu.dot_dimension_numbers<[1], [0], [0], [1], [0, 0, 1, 1], [], []>} : vector<16x128xf32>, vector<128x128xf32>, vector<16x128xf32> -> vector<16x128xf32>
    %152 = vector.broadcast %30 : vector<1x128xf32> to vector<16x128xf32>
    %153 = arith.addf %151, %152 : vector<16x128xf32>
    %154 = arith.addf %25, %153 : vector<16x128xf32>
    %cst_50 = arith.constant dense<0.000000e+00> : vector<16xf32>
    %155 = vector.multi_reduction <add>, %154, %cst_50 [1] : vector<16x128xf32> to vector<16xf32>
    %156 = vector.shape_cast %155 : vector<16xf32> to vector<16x1xf32>
    %cst_51 = arith.constant 1.280000e+02 : f32
    %157 = vector.broadcast %cst_51 : f32 to vector<16x1xf32>
    %158 = arith.divf %156, %157 : vector<16x1xf32>
    %159 = vector.broadcast %158 : vector<16x1xf32> to vector<16x128xf32>
    %160 = arith.subf %154, %159 : vector<16x128xf32>
    %161 = arith.mulf %160, %160 : vector<16x128xf32>
    %cst_52 = arith.constant dense<0.000000e+00> : vector<16xf32>
    %162 = vector.multi_reduction <add>, %161, %cst_52 [1] : vector<16x128xf32> to vector<16xf32>
    %163 = vector.shape_cast %162 : vector<16xf32> to vector<16x1xf32>
    %cst_53 = arith.constant 1.280000e+02 : f32
    %164 = vector.broadcast %cst_53 : f32 to vector<16x1xf32>
    %165 = arith.divf %163, %164 : vector<16x1xf32>
    %166 = vector.broadcast %158 : vector<16x1xf32> to vector<16x128xf32>
    %167 = arith.subf %154, %166 : vector<16x128xf32>
    %cst_54 = arith.constant 9.99999974E-6 : f32
    %168 = vector.broadcast %cst_54 : f32 to vector<16x1xf32>
    %169 = arith.addf %165, %168 : vector<16x1xf32>
    %170 = math.rsqrt %169 : vector<16x1xf32>
    %171 = vector.broadcast %170 : vector<16x1xf32> to vector<16x128xf32>
    %172 = arith.mulf %167, %171 : vector<16x128xf32>
    %173 = vector.broadcast %32 : vector<1x128xf32> to vector<16x128xf32>
    %174 = arith.mulf %172, %173 : vector<16x128xf32>
    %175 = vector.broadcast %33 : vector<1x128xf32> to vector<16x128xf32>
    %176 = arith.addf %174, %175 : vector<16x128xf32>
    %c0_55 = arith.constant 0 : index
    %c0_56 = arith.constant 0 : index
    %177 = vector.load %arg9[%c0_55, %c0_56] : memref<128x256xf32, #tpu.memory_space<vmem>>, vector<128x256xf32>
    %cst_57 = arith.constant dense<0.000000e+00> : vector<16x256xf32>
    %178 = tpu.matmul %176, %177, %cst_57 {dimension_numbers = #tpu.dot_dimension_numbers<[1], [0], [0], [1], [0, 0, 1, 1], [], []>} : vector<16x128xf32>, vector<128x256xf32>, vector<16x256xf32> -> vector<16x256xf32>
    %c0_58 = arith.constant 0 : index
    %c0_59 = arith.constant 0 : index
    %179 = vector.load %arg10[%c0_58, %c0_59] : memref<1x256xf32, #tpu.memory_space<vmem>>, vector<1x256xf32>
    %180 = vector.broadcast %179 : vector<1x256xf32> to vector<16x256xf32>
    %181 = arith.addf %178, %180 : vector<16x256xf32>
    %cst_60 = arith.constant 0.000000e+00 : f32
    %182 = vector.broadcast %cst_60 : f32 to vector<16x256xf32>
    %183 = arith.maximumf %181, %182 : vector<16x256xf32>
    %c0_61 = arith.constant 0 : index
    %c0_62 = arith.constant 0 : index
    %184 = vector.load %arg11[%c0_61, %c0_62] : memref<256x128xf32, #tpu.memory_space<vmem>>, vector<256x128xf32>
    %cst_63 = arith.constant dense<0.000000e+00> : vector<16x128xf32>
    %185 = tpu.matmul %183, %184, %cst_63 {dimension_numbers = #tpu.dot_dimension_numbers<[1], [0], [0], [1], [0, 0, 1, 1], [], []>} : vector<16x256xf32>, vector<256x128xf32>, vector<16x128xf32> -> vector<16x128xf32>
    %186 = vector.broadcast %31 : vector<1x128xf32> to vector<16x128xf32>
    %187 = arith.addf %185, %186 : vector<16x128xf32>
    %188 = arith.addf %176, %187 : vector<16x128xf32>
    %cst_64 = arith.constant dense<0.000000e+00> : vector<16xf32>
    %189 = vector.multi_reduction <add>, %188, %cst_64 [1] : vector<16x128xf32> to vector<16xf32>
    %190 = vector.shape_cast %189 : vector<16xf32> to vector<16x1xf32>
    %cst_65 = arith.constant 1.280000e+02 : f32
    %191 = vector.broadcast %cst_65 : f32 to vector<16x1xf32>
    %192 = arith.divf %190, %191 : vector<16x1xf32>
    %193 = vector.broadcast %192 : vector<16x1xf32> to vector<16x128xf32>
    %194 = arith.subf %188, %193 : vector<16x128xf32>
    %195 = arith.mulf %194, %194 : vector<16x128xf32>
    %cst_66 = arith.constant dense<0.000000e+00> : vector<16xf32>
    %196 = vector.multi_reduction <add>, %195, %cst_66 [1] : vector<16x128xf32> to vector<16xf32>
    %197 = vector.shape_cast %196 : vector<16xf32> to vector<16x1xf32>
    %cst_67 = arith.constant 1.280000e+02 : f32
    %198 = vector.broadcast %cst_67 : f32 to vector<16x1xf32>
    %199 = arith.divf %197, %198 : vector<16x1xf32>
    %200 = vector.broadcast %192 : vector<16x1xf32> to vector<16x128xf32>
    %201 = arith.subf %188, %200 : vector<16x128xf32>
    %cst_68 = arith.constant 9.99999974E-6 : f32
    %202 = vector.broadcast %cst_68 : f32 to vector<16x1xf32>
    %203 = arith.addf %199, %202 : vector<16x1xf32>
    %204 = math.rsqrt %203 : vector<16x1xf32>
    %205 = vector.broadcast %204 : vector<16x1xf32> to vector<16x128xf32>
    %206 = arith.mulf %201, %205 : vector<16x128xf32>
    %207 = vector.broadcast %34 : vector<1x128xf32> to vector<16x128xf32>
    %208 = arith.mulf %206, %207 : vector<16x128xf32>
    %209 = vector.broadcast %35 : vector<1x128xf32> to vector<16x128xf32>
    %210 = arith.addf %208, %209 : vector<16x128xf32>
    %c0_69 = arith.constant 0 : index
    %c0_70 = arith.constant 0 : index
    %211 = vector.load %arg13[%c0_69, %c0_70] : memref<16x128xf32, #tpu.memory_space<vmem>>, vector<16x128xf32>
    tpu.vector_store %arg13[%c0_69, %c0_70], %210 {strides = array<i32>} : memref<16x128xf32, #tpu.memory_space<vmem>>, vector<16x128xf32>,
    return
  }
}

</mosaic_0001>

<llo_original>
// kernel: cross_attn_layer_pallas.1
$region0: #{cross_attn_layer_pallas.1}
  #allocation0 [shape = 'u32[]', space=smem, size = 0x4, offset = 0x4, fixed_abs, tag = 'smem constant byte address 0x4 - core index']
  #allocation1 [shape = 'u32[144,128]{1,0:T(1,128)}', space=vmem, size = 0x12000, scoped, tag = 'internal scratch']
  %s0 = inlined_call_operand.vmem [shape: f32[2,92], index: 0, kind: input, shape index: {}]
  %s1 = inlined_call_operand.hbm [shape: f32[16,128], index: 1, kind: input, shape index: {}]
  %s2 = inlined_call_operand.hbm [shape: f32[16,128], index: 2, kind: input, shape index: {}]
  %s3 = inlined_call_operand.hbm [shape: f32[92,1024], index: 3, kind: input, shape index: {}]
  %s4 = inlined_call_operand.vmem [shape: f32[1,1024], index: 4, kind: input, shape index: {}]
  %s5 = inlined_call_operand.hbm [shape: f32[128,128], index: 5, kind: input, shape index: {}]
  %s6 = inlined_call_operand.hbm [shape: f32[128,256], index: 6, kind: input, shape index: {}]
  %s7 = inlined_call_operand.vmem [shape: f32[1,256], index: 7, kind: input, shape index: {}]
  %s8 = inlined_call_operand.hbm [shape: f32[128,128], index: 8, kind: input, shape index: {}]
  %s9 = inlined_call_operand.hbm [shape: f32[128,256], index: 9, kind: input, shape index: {}]
  %s10 = inlined_call_operand.hbm [shape: f32[1,256], index: 10, kind: input, shape index: {}]
  %s11 = inlined_call_operand.hbm [shape: f32[256,128], index: 11, kind: input, shape index: {}]
  %s12 = inlined_call_operand.vmem [shape: f32[8,128], index: 12, kind: input, shape index: {}]
  %s13 = inlined_call_operand.hbm [shape: f32[16,128], index: 13, kind: output, shape index: {}]
  %s14 = sld [smem:[#allocation0]]
  $region98: #{cross_attn_layer_pallas.1} parent=0
    _
  %s16 = ssub.s32 1, %s14
  %s17 = scalar_select 0, %s16, %s14
  $region1: #{cross_attn_layer_pallas.1} parent=0
    #allocation2 [shape = 'u8[8192]{0}', space=vmem, size = 0x2000, scoped, tag = 'input window, operand 1, single buffered']
    #allocation3 [shape = 's32[1]{0}', space=sflag, size = 0x4, scoped, tag = 'scoped memory for cross_attn_layer_pallas.1']
    #allocation4 [shape = 's32[1]{0}', space=sflag, size = 0x4, scoped, tag = 'scoped memory for cross_attn_layer_pallas.1']
    #allocation5 [shape = 'u8[8192]{0}', space=vmem, size = 0x2000, scoped, tag = 'input window, operand 2, single buffered']
    #allocation6 [shape = 's32[1]{0}', space=sflag, size = 0x4, scoped, tag = 'scoped memory for cross_attn_layer_pallas.1']
    #allocation7 [shape = 'u8[393216]{0}', space=vmem, size = 0x60000, scoped, tag = 'input window, operand 3, single buffered']
    #allocation8 [shape = 'u8[65536]{0}', space=vmem, size = 0x10000, scoped, tag = 'input window, operand 5, single buffered']
    #allocation9 [shape = 's32[1]{0}', space=sflag, size = 0x4, scoped, tag = 'scoped memory for cross_attn_layer_pallas.1']
    #allocation10 [shape = 'u8[131072]{0}', space=vmem, size = 0x20000, scoped, tag = 'input window, operand 6, single buffered']
    #allocation11 [shape = 'u8[65536]{0}', space=vmem, size = 0x10000, scoped, tag = 'input window, operand 8, single buffered']
    #allocation12 [shape = 's32[1]{0}', space=sflag, size = 0x4, scoped, tag = 'scoped memory for cross_attn_layer_pallas.1']
    #allocation13 [shape = 'u8[131072]{0}', space=vmem, size = 0x20000, scoped, tag = 'input window, operand 9, single buffered']
    #allocation14 [shape = 'u8[1024]{0}', space=vmem, size = 0x400, scoped, tag = 'input window, operand 10, single buffered']
    #allocation15 [shape = 's32[1]{0}', space=sflag, size = 0x4, scoped, tag = 'scoped memory for cross_attn_layer_pallas.1']
    #allocation16 [shape = 'u8[131072]{0}', space=vmem, size = 0x20000, scoped, tag = 'input window, operand 11, single buffered']
    #allocation17 [shape = 'u8[8192]{0}', space=vmem, size = 0x2000, scoped, tag = 'output window, operand 0, single buffered']
    %18 = vsyncpa [#allocation3], 0
    %19 = vsyncpa [#allocation6], 0
    %20 = vsyncpa [#allocation9], 0
    %21 = vsyncpa [#allocation12], 0
    %22 = vsyncpa [#allocation15], 0
    %23 = vsyncpa [#allocation4], 0
    // Predicated region
    $region2: #{cross_attn_layer_pallas.1} parent=1 // pred_check
      _
    $region3: #{cross_attn_layer_pallas.1} parent=1 // pred_check_branch
      %25 = sbr.rel (0) target = $region5
    $region4: #{cross_attn_layer_pallas.1} parent=1 // pred_region
      _
    $region5: #{cross_attn_layer_pallas.1} parent=1 // pred_fallthru
      _
    // Predicated region
    $region6: #{cross_attn_layer_pallas.1} parent=1 // pred_check
      _
    $region7: #{cross_attn_layer_pallas.1} parent=1 // pred_check_branch
      %27 = sbr.rel (0) target = $region9
    $region8: #{cross_attn_layer_pallas.1} parent=1 // pred_region
      %s29 = ssub.s32 256, 256
      %30 = vsyncadd [#allocation3], %s29
      %s31 = sshll.u32 [#allocation2], 4
      %s32 = int_to_ptr.vmem [resolvable:$true] %s31
      %37 = dma.hbm_to_vmem [thread:$0]  %s1, 256, %s32, [#allocation3], 128, 128, 8
    $region9: #{cross_attn_layer_pallas.1} parent=1 // pred_fallthru
      _
    // Predicated region
    $region10: #{cross_attn_layer_pallas.1} parent=1 // pred_check
      _
    $region11: #{cross_attn_layer_pallas.1} parent=1 // pred_check_branch
      %39 = sbr.rel (0) target = $region13
    $region12: #{cross_attn_layer_pallas.1} parent=1 // pred_region
      %s41 = ssub.s32 256, 256
      %42 = vsyncadd [#allocation6], %s41
      %s43 = sshll.u32 [#allocation5], 4
      %s44 = int_to_ptr.vmem [resolvable:$true] %s43
      %49 = dma.hbm_to_vmem [thread:$0]  %s2, 256, %s44, [#allocation6], 128, 128, 8
    $region13: #{cross_attn_layer_pallas.1} parent=1 // pred_fallthru
      _
    // Predicated region
    $region14: #{cross_attn_layer_pallas.1} parent=1 // pred_check
      _
    $region15: #{cross_attn_layer_pallas.1} parent=1 // pred_check_branch
      %51 = sbr.rel (0) target = $region17
    $region16: #{cross_attn_layer_pallas.1} parent=1 // pred_region
      %s53 = ssub.s32 12288, 12288
      %54 = vsyncadd [#allocation6], %s53
      %s55 = sshll.u32 [#allocation7], 4
      %s56 = int_to_ptr.vmem [resolvable:$true] %s55
      %61 = dma.hbm_to_vmem [thread:$0]  %s3, 12288, %s56, [#allocation6], 1024, 1024, 64
    $region17: #{cross_attn_layer_pallas.1} parent=1 // pred_fallthru
      _
    // Predicated region
    $region18: #{cross_attn_layer_pallas.1} parent=1 // pred_check
      _
    $region19: #{cross_attn_layer_pallas.1} parent=1 // pred_check_branch
      %63 = sbr.rel (0) target = $region21
    $region20: #{cross_attn_layer_pallas.1} parent=1 // pred_region
      _
    $region21: #{cross_attn_layer_pallas.1} parent=1 // pred_fallthru
      _
    // Predicated region
    $region22: #{cross_attn_layer_pallas.1} parent=1 // pred_check
      _
    $region23: #{cross_attn_layer_pallas.1} parent=1 // pred_check_branch
      %65 = sbr.rel (0) target = $region25
    $region24: #{cross_attn_layer_pallas.1} parent=1 // pred_region
      %s67 = ssub.s32 2048, 2048
      %68 = vsyncadd [#allocation9], %s67
      %s69 = sshll.u32 [#allocation8], 4
      %s70 = int_to_ptr.vmem [resolvable:$true] %s69
      %75 = dma.hbm_to_vmem [thread:$0]  %s5, 2048, %s70, [#allocation9], 128, 128, 8
    $region25: #{cross_attn_layer_pallas.1} parent=1 // pred_fallthru
      _
    // Predicated region
    $region26: #{cross_attn_layer_pallas.1} parent=1 // pred_check
      _
    $region27: #{cross_attn_layer_pallas.1} parent=1 // pred_check_branch
      %77 = sbr.rel (0) target = $region29
    $region28: #{cross_attn_layer_pallas.1} parent=1 // pred_region
      %s79 = ssub.s32 4096, 4096
      %80 = vsyncadd [#allocation9], %s79
      %s81 = sshll.u32 [#allocation10], 4
      %s82 = int_to_ptr.vmem [resolvable:$true] %s81
      %87 = dma.hbm_to_vmem [thread:$0]  %s6, 4096, %s82, [#allocation9], 256, 256, 16
    $region29: #{cross_attn_layer_pallas.1} parent=1 // pred_fallthru
      _
    // Predicated region
    $region30: #{cross_attn_layer_pallas.1} parent=1 // pred_check
      _
    $region31: #{cross_attn_layer_pallas.1} parent=1 // pred_check_branch
      %89 = sbr.rel (0) target = $region33
    $region32: #{cross_attn_layer_pallas.1} parent=1 // pred_region
      _
    $region33: #{cross_attn_layer_pallas.1} parent=1 // pred_fallthru
      _
    // Predicated region
    $region34: #{cross_attn_layer_pallas.1} parent=1 // pred_check
      _
    $region35: #{cross_attn_layer_pallas.1} parent=1 // pred_check_branch
      %91 = sbr.rel (0) target = $region37
    $region36: #{cross_attn_layer_pallas.1} parent=1 // pred_region
      %s93 = ssub.s32 2048, 2048
      %94 = vsyncadd [#allocation12], %s93
      %s95 = sshll.u32 [#allocation11], 4
      %s96 = int_to_ptr.vmem [resolvable:$true] %s95
      %101 = dma.hbm_to_vmem [thread:$0]  %s8, 2048, %s96, [#allocation12], 128, 128, 8
    $region37: #{cross_attn_layer_pallas.1} parent=1 // pred_fallthru
      _
    // Predicated region
    $region38: #{cross_attn_layer_pallas.1} parent=1 // pred_check
      _
    $region39: #{cross_attn_layer_pallas.1} parent=1 // pred_check_branch
      %103 = sbr.rel (0) target = $region41
    $region40: #{cross_attn_layer_pallas.1} parent=1 // pred_region
      %s105 = ssub.s32 4096, 4096
      %106 = vsyncadd [#allocation12], %s105
      %s107 = sshll.u32 [#allocation13], 4
      %s108 = int_to_ptr.vmem [resolvable:$true] %s107
      %113 = dma.hbm_to_vmem [thread:$0]  %s9, 4096, %s108, [#allocation12], 256, 256, 16
    $region41: #{cross_attn_layer_pallas.1} parent=1 // pred_fallthru
      _
    // Predicated region
    $region42: #{cross_attn_layer_pallas.1} parent=1 // pred_check
      _
    $region43: #{cross_attn_layer_pallas.1} parent=1 // pred_check_branch
      %115 = sbr.rel (0) target = $region45
    $region44: #{cross_attn_layer_pallas.1} parent=1 // pred_region
      %s117 = ssub.s32 32, 32
      %118 = vsyncadd [#allocation15], %s117
      %s120 = sshll.u32 [#allocation14], 4
      %s121 = int_to_ptr.vmem [resolvable:$true] %s120
      %123 = dma.hbm_to_vmem [thread:$0]  %s10, 32, %s121, [#allocation15]
    $region45: #{cross_attn_layer_pallas.1} parent=1 // pred_fallthru
      _
    // Predicated region
    $region46: #{cross_attn_layer_pallas.1} parent=1 // pred_check
      _
    $region47: #{cross_attn_layer_pallas.1} parent=1 // pred_check_branch
      %125 = sbr.rel (0) target = $region49
    $region48: #{cross_attn_layer_pallas.1} parent=1 // pred_region
      %s127 = ssub.s32 4096, 4096
      %128 = vsyncadd [#allocation15], %s127
      %s129 = sshll.u32 [#allocation16], 4
      %s130 = int_to_ptr.vmem [resolvable:$true] %s129
      %135 = dma.hbm_to_vmem [thread:$0]  %s11, 4096, %s130, [#allocation15], 128, 128, 8
    $region49: #{cross_attn_layer_pallas.1} parent=1 // pred_fallthru
      _
    // Predicated region
    $region50: #{cross_attn_layer_pallas.1} parent=1 // pred_check
      _
    $region51: #{cross_attn_layer_pallas.1} parent=1 // pred_check_branch
      %137 = sbr.rel (0) target = $region53
    $region52: #{cross_attn_layer_pallas.1} parent=1 // pred_region
      _
    $region53: #{cross_attn_layer_pallas.1} parent=1 // pred_fallthru
      _
    // Predicated region
    $region54: #{cross_attn_layer_pallas.1} parent=1 // pred_check
      _
    $region55: #{cross_attn_layer_pallas.1} parent=1 // pred_check_branch
      %139 = sbr.rel (0) target = $region57
    $region56: #{cross_attn_layer_pallas.1} parent=1 // pred_region
      %140 = dma.done [#allocation3], 256
    $region57: #{cross_attn_layer_pallas.1} parent=1 // pred_fallthru
      _
    // Predicated region
    $region58: #{cross_attn_layer_pallas.1} parent=1 // pred_check
      _
    $region59: #{cross_attn_layer_pallas.1} parent=1 // pred_check_branch
      %142 = sbr.rel (0) target = $region61
    $region60: #{cross_attn_layer_pallas.1} parent=1 // pred_region
      %143 = dma.done [#allocation6], 256
    $region61: #{cross_attn_layer_pallas.1} parent=1 // pred_fallthru
      _
    // Predicated region
    $region62: #{cross_attn_layer_pallas.1} parent=1 // pred_check
      _
    $region63: #{cross_attn_layer_pallas.1} parent=1 // pred_check_branch
      %145 = sbr.rel (0) target = $region65
    $region64: #{cross_attn_layer_pallas.1} parent=1 // pred_region
      %146 = dma.done [#allocation6], 12288
    $region65: #{cross_attn_layer_pallas.1} parent=1 // pred_fallthru
      _
    // Predicated region
    $region66: #{cross_attn_layer_pallas.1} parent=1 // pred_check
      _
    $region67: #{cross_attn_layer_pallas.1} parent=1 // pred_check_branch
      %148 = sbr.rel (0) target = $region69
    $region68: #{cross_attn_layer_pallas.1} parent=1 // pred_region
      %149 = dma.done [#allocation9], 2048
    $region69: #{cross_attn_layer_pallas.1} parent=1 // pred_fallthru
      _
    // Predicated region
    $region70: #{cross_attn_layer_pallas.1} parent=1 // pred_check
      _
    $region71: #{cross_attn_layer_pallas.1} parent=1 // pred_check_branch
      %151 = sbr.rel (0) target = $region73
    $region72: #{cross_attn_layer_pallas.1} parent=1 // pred_region
      %152 = dma.done [#allocation9], 4096
    $region73: #{cross_attn_layer_pallas.1} parent=1 // pred_fallthru
      _
    // Predicated region
    $region74: #{cross_attn_layer_pallas.1} parent=1 // pred_check
      _
    $region75: #{cross_attn_layer_pallas.1} parent=1 // pred_check_branch
      %154 = sbr.rel (0) target = $region77
    $region76: #{cross_attn_layer_pallas.1} parent=1 // pred_region
      %155 = dma.done [#allocation12], 2048
    $region77: #{cross_attn_layer_pallas.1} parent=1 // pred_fallthru
      _
    // Predicated region
    $region78: #{cross_attn_layer_pallas.1} parent=1 // pred_check
      _
    $region79: #{cross_attn_layer_pallas.1} parent=1 // pred_check_branch
      %157 = sbr.rel (0) target = $region81
    $region80: #{cross_attn_layer_pallas.1} parent=1 // pred_region
      %158 = dma.done [#allocation12], 4096
    $region81: #{cross_attn_layer_pallas.1} parent=1 // pred_fallthru
      _
    // Predicated region
    $region82: #{cross_attn_layer_pallas.1} parent=1 // pred_check
      _
    $region83: #{cross_attn_layer_pallas.1} parent=1 // pred_check_branch
      %160 = sbr.rel (0) target = $region85
    $region84: #{cross_attn_layer_pallas.1} parent=1 // pred_region
      %161 = dma.done [#allocation15], 32
    $region85: #{cross_attn_layer_pallas.1} parent=1 // pred_fallthru
      _
    // Predicated region
    $region86: #{cross_attn_layer_pallas.1} parent=1 // pred_check
      _
    $region87: #{cross_attn_layer_pallas.1} parent=1 // pred_check_branch
      %163 = sbr.rel (0) target = $region89
    $region88: #{cross_attn_layer_pallas.1} parent=1 // pred_region
      %164 = dma.done [#allocation15], 4096
    $region89: #{cross_attn_layer_pallas.1} parent=1 // pred_fallthru
      _
    %v165 = vld [vmem:[%s0] sm:$0x3]
    %v166 = vld [vmem:[#allocation7] sm:$0xff]
    %v167 = vld [vmem:[#allocation7 + $0x8] sm:$0xff]
    %v168 = vld [vmem:[#allocation7 + $0x10] sm:$0xff]
    %v169 = vld [vmem:[#allocation7 + $0x18] sm:$0xff]
    %v170 = vld [vmem:[#allocation7 + $0x20] sm:$0xff]
    %v171 = vld [vmem:[#allocation7 + $0x28] sm:$0xff]
    %v172 = vld [vmem:[#allocation7 + $0x30] sm:$0xff]
    %v173 = vld [vmem:[#allocation7 + $0x38] sm:$0xff]
    %v174 = vld [vmem:[#allocation7 + $0x40] sm:$0xff]
    %v175 = vld [vmem:[#allocation7 + $0x48] sm:$0xff]
    %v176 = vld [vmem:[#allocation7 + $0x50] sm:$0xff]
    %v177 = vld [vmem:[#allocation7 + $0x58] sm:$0xff]
    %v178 = vld [vmem:[#allocation7 + $0x60] sm:$0xff]
    %v179 = vld [vmem:[#allocation7 + $0x68] sm:$0xff]
    %v180 = vld [vmem:[#allocation7 + $0x70] sm:$0xff]
    %v181 = vld [vmem:[#allocation7 + $0x78] sm:$0xff]
    %v182 = vld [vmem:[#allocation7 + $0x80] sm:$0xff]
    %v183 = vld [vmem:[#allocation7 + $0x88] sm:$0xff]
    %v184 = vld [vmem:[#allocation7 + $0x90] sm:$0xff]
    %v185 = vld [vmem:[#allocation7 + $0x98] sm:$0xff]
    %v186 = vld [vmem:[#allocation7 + $0xa0] sm:$0xff]
    %v187 = vld [vmem:[#allocation7 + $0xa8] sm:$0xff]
    %v188 = vld [vmem:[#allocation7 + $0xb0] sm:$0xff]
    %v189 = vld [vmem:[#allocation7 + $0xb8] sm:$0xff]
    %v190 = vld [vmem:[#allocation7 + $0xc0] sm:$0xff]
    %v191 = vld [vmem:[#allocation7 + $0xc8] sm:$0xff]
    %v192 = vld [vmem:[#allocation7 + $0xd0] sm:$0xff]
    %v193 = vld [vmem:[#allocation7 + $0xd8] sm:$0xff]
    %v194 = vld [vmem:[#allocation7 + $0xe0] sm:$0xff]
    %v195 = vld [vmem:[#allocation7 + $0xe8] sm:$0xff]
    %v196 = vld [vmem:[#allocation7 + $0xf0] sm:$0xff]
    %v197 = vld [vmem:[#allocation7 + $0xf8] sm:$0xff]
    %v198 = vld [vmem:[#allocation7 + $0x100] sm:$0xff]
    %v199 = vld [vmem:[#allocation7 + $0x108] sm:$0xff]
    %v200 = vld [vmem:[#allocation7 + $0x110] sm:$0xff]
    %v201 = vld [vmem:[#allocation7 + $0x118] sm:$0xff]
    %v202 = vld [vmem:[#allocation7 + $0x120] sm:$0xff]
    %v203 = vld [vmem:[#allocation7 + $0x128] sm:$0xff]
    %v204 = vld [vmem:[#allocation7 + $0x130] sm:$0xff]
    %v205 = vld [vmem:[#allocation7 + $0x138] sm:$0xff]
    %v206 = vld [vmem:[#allocation7 + $0x140] sm:$0xff]
    %v207 = vld [vmem:[#allocation7 + $0x148] sm:$0xff]
    %v208 = vld [vmem:[#allocation7 + $0x150] sm:$0xff]
    %v209 = vld [vmem:[#allocation7 + $0x158] sm:$0xff]
    %v210 = vld [vmem:[#allocation7 + $0x160] sm:$0xff]
    %v211 = vld [vmem:[#allocation7 + $0x168] sm:$0xff]
    %v212 = vld [vmem:[#allocation7 + $0x170] sm:$0xff]
    %v213 = vld [vmem:[#allocation7 + $0x178] sm:$0xff]
    %v214 = vld [vmem:[#allocation7 + $0x180] sm:$0xff]
    %v215 = vld [vmem:[#allocation7 + $0x188] sm:$0xff]
    %v216 = vld [vmem:[#allocation7 + $0x190] sm:$0xff]
    %v217 = vld [vmem:[#allocation7 + $0x198] sm:$0xff]
    %v218 = vld [vmem:[#allocation7 + $0x1a0] sm:$0xff]
    %v219 = vld [vmem:[#allocation7 + $0x1a8] sm:$0xff]
    %v220 = vld [vmem:[#allocation7 + $0x1b0] sm:$0xff]
    %v221 = vld [vmem:[#allocation7 + $0x1b8] sm:$0xff]
    %v222 = vld [vmem:[#allocation7 + $0x1c0] sm:$0xff]
    %v223 = vld [vmem:[#allocation7 + $0x1c8] sm:$0xff]
    %v224 = vld [vmem:[#allocation7 + $0x1d0] sm:$0xff]
    %v225 = vld [vmem:[#allocation7 + $0x1d8] sm:$0xff]
    %v226 = vld [vmem:[#allocation7 + $0x1e0] sm:$0xff]
    %v227 = vld [vmem:[#allocation7 + $0x1e8] sm:$0xff]
    %v228 = vld [vmem:[#allocation7 + $0x1f0] sm:$0xff]
    %v229 = vld [vmem:[#allocation7 + $0x1f8] sm:$0xff]
    %v230 = vld [vmem:[#allocation7 + $0x200] sm:$0xff]
    %v231 = vld [vmem:[#allocation7 + $0x208] sm:$0xff]
    %v232 = vld [vmem:[#allocation7 + $0x210] sm:$0xff]
    %v233 = vld [vmem:[#allocation7 + $0x218] sm:$0xff]
    %v234 = vld [vmem:[#allocation7 + $0x220] sm:$0xff]
    %v235 = vld [vmem:[#allocation7 + $0x228] sm:$0xff]
    %v236 = vld [vmem:[#allocation7 + $0x230] sm:$0xff]
    %v237 = vld [vmem:[#allocation7 + $0x238] sm:$0xff]
    %v238 = vld [vmem:[#allocation7 + $0x240] sm:$0xff]
    %v239 = vld [vmem:[#allocation7 + $0x248] sm:$0xff]
    %v240 = vld [vmem:[#allocation7 + $0x250] sm:$0xff]
    %v241 = vld [vmem:[#allocation7 + $0x258] sm:$0xff]
    %v242 = vld [vmem:[#allocation7 + $0x260] sm:$0xff]
    %v243 = vld [vmem:[#allocation7 + $0x268] sm:$0xff]
    %v244 = vld [vmem:[#allocation7 + $0x270] sm:$0xff]
    %v245 = vld [vmem:[#allocation7 + $0x278] sm:$0xff]
    %v246 = vld [vmem:[#allocation7 + $0x280] sm:$0xff]
    %v247 = vld [vmem:[#allocation7 + $0x288] sm:$0xff]
    %v248 = vld [vmem:[#allocation7 + $0x290] sm:$0xff]
    %v249 = vld [vmem:[#allocation7 + $0x298] sm:$0xff]
    %v250 = vld [vmem:[#allocation7 + $0x2a0] sm:$0xff]
    %v251 = vld [vmem:[#allocation7 + $0x2a8] sm:$0xff]
    %v252 = vld [vmem:[#allocation7 + $0x2b0] sm:$0xff]
    %v253 = vld [vmem:[#allocation7 + $0x2b8] sm:$0xff]
    %v254 = vld [vmem:[#allocation7 + $0x2c0] sm:$0xf]
    %v255 = vld [vmem:[#allocation7 + $0x2c8] sm:$0xf]
    %v256 = vld [vmem:[#allocation7 + $0x2d0] sm:$0xf]
    %v257 = vld [vmem:[#allocation7 + $0x2d8] sm:$0xf]
    %v258 = vld [vmem:[#allocation7 + $0x2e0] sm:$0xf]
    %v259 = vld [vmem:[#allocation7 + $0x2e8] sm:$0xf]
    %v260 = vld [vmem:[#allocation7 + $0x2f0] sm:$0xf]
    %v261 = vld [vmem:[#allocation7 + $0x2f8] sm:$0xf]
    %v262 = vld [vmem:[%s4] sm:$0xff]
    %v264 = vlaneseq
    %v265 = vshrl.u32 %v264, 7
    %v266 = vsub.s32 0, %v265
    %v267 = vrot.slane %v262, %v266
    %v268 = vlaneseq
    %v269 = vshrl.u32 %v268, 7
    %v270 = vsub.s32 1, %v269
    %v271 = vrot.slane %v262, %v270
    %v272 = vlaneseq
    %v273 = vshrl.u32 %v272, 7
    %v274 = vsub.s32 2, %v273
    %v275 = vrot.slane %v262, %v274
    %v276 = vlaneseq
    %v277 = vshrl.u32 %v276, 7
    %v278 = vsub.s32 3, %v277
    %v279 = vrot.slane %v262, %v278
    %v280 = vlaneseq
    %v281 = vshrl.u32 %v280, 7
    %v282 = vsub.s32 4, %v281
    %v283 = vrot.slane %v262, %v282
    %v284 = vlaneseq
    %v285 = vshrl.u32 %v284, 7
    %v286 = vsub.s32 5, %v285
    %v287 = vrot.slane %v262, %v286
    %v288 = vlaneseq
    %v289 = vshrl.u32 %v288, 7
    %v290 = vsub.s32 6, %v289
    %v291 = vrot.slane %v262, %v290
    %v292 = vlaneseq
    %v293 = vshrl.u32 %v292, 7
    %v294 = vsub.s32 7, %v293
    %v295 = vrot.slane %v262, %v294
    %vm304 = vcmask 752640
    %v306 = vsel %vm304, %v165, 0
    %vm308 = vcmask 1043456
    %v310 = vsel %vm308, %v254, 0
    %v313 = vsel %vm308, %v255, 0
    %v316 = vsel %vm308, %v256, 0
    %v319 = vsel %vm308, %v257, 0
    %v322 = vsel %vm308, %v258, 0
    %v325 = vsel %vm308, %v259, 0
    %v328 = vsel %vm308, %v260, 0
    %v331 = vsel %vm308, %v261, 0
    %333 = vmatprep.subr.mxu0 %v167
    %334 = vmatpush1.msra.mxu0 %v166
    %335 = vmatprep.subr.mxu0 %v175
    %336 = vmatpush1.msra.mxu0 %v174
    %337 = vmatprep.subr.mxu0 %v183
    %338 = vmatpush1.msra.mxu0 %v182
    %339 = vmatprep.subr.mxu0 %v191
    %340 = vmatpush1.msra.mxu0 %v190
    %341 = vmatprep.subr.mxu0 %v199
    %342 = vmatpush1.msra.mxu0 %v198
    %343 = vmatprep.subr.mxu0 %v207
    %344 = vmatpush1.msra.mxu0 %v206
    %345 = vmatprep.subr.mxu0 %v215
    %346 = vmatpush1.msra.mxu0 %v214
    %347 = vmatprep.subr.mxu0 %v223
    %348 = vmatpush1.msra.mxu0 %v222
    %349 = vmatprep.subr.mxu0 %v231
    %350 = vmatpush1.msra.mxu0 %v230
    %351 = vmatprep.subr.mxu0 %v239
    %352 = vmatpush1.msra.mxu0 %v238
    %353 = vmatprep.subr.mxu0 %v247
    %354 = vmatpush1.msra.mxu0 %v246
    %355 = vmatprep.subr.mxu0 %v313
    %356 = vmatpush1.msra.mxu0 %v310
    %357 = vmatprep.subr.mxu0 0.0
    %358 = vmatpush1.msra.mxu0 0.0
    %359 = vmatprep.subr.mxu0 0.0
    %360 = vmatpush1.msra.mxu0 0.0
    %361 = vmatprep.subr.mxu0 0.0
    %362 = vmatpush1.msra.mxu0 0.0
    %363 = vmatprep.subr.mxu0 0.0
    %364 = vmatpush1.msra.mxu0 0.0
    %365 = vmatprep.subr.mxu0 0.0
    %366 = vmatpush1.msra.mxu0 0.0
    %367 = vmatprep.subr.mxu0 0.0
    %368 = vmatpush1.msra.mxu0 0.0
    %369 = vmatprep.subr.mxu0 0.0
    %370 = vmatpush1.msra.mxu0 0.0
    %371 = vmatprep.subr.mxu0 0.0
    %372 = vmatpush1.msra.mxu0 0.0
    %373 = vmatprep.subr.mxu0 0.0
    %374 = vmatpush1.msra.mxu0 0.0
    %375 = vmatprep.subr.mxu0 0.0
    %376 = vmatpush1.msra.mxu0 0.0
    %377 = vmatprep.subr.mxu0 0.0
    %378 = vmatpush1.msra.mxu0 0.0
    %379 = vmatprep.subr.mxu0 0.0
    %380 = vmatpush1.msra.mxu0 0.0
    %381 = vmatprep.subr.mxu0 0.0
    %382 = vmatpush1.msra.mxu0 0.0
    %383 = vmatprep.subr.mxu0 0.0
    %384 = vmatpush1.msra.mxu0 0.0
    %385 = vmatprep.subr.mxu0 0.0
    %386 = vmatpush1.msra.mxu0 0.0
    %387 = vmatprep.subr.mxu0 0.0
    %388 = vmatpush1.msra.mxu0 0.0
    %389 = vmatprep.subr.mxu0 0.0
    %390 = vmatpush1.msra.mxu0 0.0
    %391 = vmatprep.subr.mxu0 0.0
    %392 = vmatpush1.msra.mxu0 0.0
    %393 = vmatprep.subr.mxu0 0.0
    %394 = vmatpush1.msra.mxu0 0.0
    %395 = vmatprep.subr.mxu0 0.0
    %396 = vmatpush1.msra.mxu0 0.0
    %397 = vmatprep.mubr.f32.mxu0 0.0
    %398 = vmatmul.mubr.f32.gmra.mrb[0].mxu0 %v306
    %v399 = vpop.f32.mrb[0].mxu0
    %v400 = vadd.f32 %v267, %v399
    %v401 = vpop.f32.mrb[0].mxu0
    %v402 = vadd.f32 %v271, %v401
    %403 = vdwg.mxu0
    %404 = vmatprep.subr.mxu0 %v169
    %405 = vmatpush1.msra.mxu0 %v168
    %406 = vmatprep.subr.mxu0 %v177
    %407 = vmatpush1.msra.mxu0 %v176
    %408 = vmatprep.subr.mxu0 %v185
    %409 = vmatpush1.msra.mxu0 %v184
    %410 = vmatprep.subr.mxu0 %v193
    %411 = vmatpush1.msra.mxu0 %v192
    %412 = vmatprep.subr.mxu0 %v201
    %413 = vmatpush1.msra.mxu0 %v200
    %414 = vmatprep.subr.mxu0 %v209
    %415 = vmatpush1.msra.mxu0 %v208
    %416 = vmatprep.subr.mxu0 %v217
    %417 = vmatpush1.msra.mxu0 %v216
    %418 = vmatprep.subr.mxu0 %v225
    %419 = vmatpush1.msra.mxu0 %v224
    %420 = vmatprep.subr.mxu0 %v233
    %421 = vmatpush1.msra.mxu0 %v232
    %422 = vmatprep.subr.mxu0 %v241
    %423 = vmatpush1.msra.mxu0 %v240
    %424 = vmatprep.subr.mxu0 %v249
    %425 = vmatpush1.msra.mxu0 %v248
    %426 = vmatprep.subr.mxu0 %v319
    %427 = vmatpush1.msra.mxu0 %v316
    %428 = vmatprep.subr.mxu0 0.0
    %429 = vmatpush1.msra.mxu0 0.0
    %430 = vmatprep.subr.mxu0 0.0
    %431 = vmatpush1.msra.mxu0 0.0
    %432 = vmatprep.subr.mxu0 0.0
    %433 = vmatpush1.msra.mxu0 0.0
    %434 = vmatprep.subr.mxu0 0.0
    %435 = vmatpush1.msra.mxu0 0.0
    %436 = vmatprep.subr.mxu0 0.0
    %437 = vmatpush1.msra.mxu0 0.0
    %438 = vmatprep.subr.mxu0 0.0
    %439 = vmatpush1.msra.mxu0 0.0
    %440 = vmatprep.subr.mxu0 0.0
    %441 = vmatpush1.msra.mxu0 0.0
    %442 = vmatprep.subr.mxu0 0.0
    %443 = vmatpush1.msra.mxu0 0.0
    %444 = vmatprep.subr.mxu0 0.0
    %445 = vmatpush1.msra.mxu0 0.0
    %446 = vmatprep.subr.mxu0 0.0
    %447 = vmatpush1.msra.mxu0 0.0
    %448 = vmatprep.subr.mxu0 0.0
    %449 = vmatpush1.msra.mxu0 0.0
    %450 = vmatprep.subr.mxu0 0.0
    %451 = vmatpush1.msra.mxu0 0.0
    %452 = vmatprep.subr.mxu0 0.0
    %453 = vmatpush1.msra.mxu0 0.0
    %454 = vmatprep.subr.mxu0 0.0
    %455 = vmatpush1.msra.mxu0 0.0
    %456 = vmatprep.subr.mxu0 0.0
    %457 = vmatpush1.msra.mxu0 0.0
    %458 = vmatprep.subr.mxu0 0.0
    %459 = vmatpush1.msra.mxu0 0.0
    %460 = vmatprep.subr.mxu0 0.0
    %461 = vmatpush1.msra.mxu0 0.0
    %462 = vmatprep.subr.mxu0 0.0
    %463 = vmatpush1.msra.mxu0 0.0
    %464 = vmatprep.subr.mxu0 0.0
    %465 = vmatpush1.msra.mxu0 0.0
    %466 = vmatprep.subr.mxu0 0.0
    %467 = vmatpush1.msra.mxu0 0.0
    %468 = vmatprep.mubr.f32.mxu0 0.0
    %469 = vmatmul.mubr.f32.gmra.mrb[0].mxu0 %v306
    %v470 = vpop.f32.mrb[0].mxu0
    %v471 = vadd.f32 %v275, %v470
    %v472 = vpop.f32.mrb[0].mxu0
    %v473 = vadd.f32 %v279, %v472
    %474 = vdwg.mxu0
    %475 = vmatprep.subr.mxu0 %v171
    %476 = vmatpush1.msra.mxu0 %v170
    %477 = vmatprep.subr.mxu0 %v179
    %478 = vmatpush1.msra.mxu0 %v178
    %479 = vmatprep.subr.mxu0 %v187
    %480 = vmatpush1.msra.mxu0 %v186
    %481 = vmatprep.subr.mxu0 %v195
    %482 = vmatpush1.msra.mxu0 %v194
    %483 = vmatprep.subr.mxu0 %v203
    %484 = vmatpush1.msra.mxu0 %v202
    %485 = vmatprep.subr.mxu0 %v211
    %486 = vmatpush1.msra.mxu0 %v210
    %487 = vmatprep.subr.mxu0 %v219
    %488 = vmatpush1.msra.mxu0 %v218
    %489 = vmatprep.subr.mxu0 %v227
    %490 = vmatpush1.msra.mxu0 %v226
    %491 = vmatprep.subr.mxu0 %v235
    %492 = vmatpush1.msra.mxu0 %v234
    %493 = vmatprep.subr.mxu0 %v243
    %494 = vmatpush1.msra.mxu0 %v242
    %495 = vmatprep.subr.mxu0 %v251
    %496 = vmatpush1.msra.mxu0 %v250
    %497 = vmatprep.subr.mxu0 %v325
    %498 = vmatpush1.msra.mxu0 %v322
    %499 = vmatprep.subr.mxu0 0.0
    %500 = vmatpush1.msra.mxu0 0.0
    %501 = vmatprep.subr.mxu0 0.0
    %502 = vmatpush1.msra.mxu0 0.0
    %503 = vmatprep.subr.mxu0 0.0
    %504 = vmatpush1.msra.mxu0 0.0
    %505 = vmatprep.subr.mxu0 0.0
    %506 = vmatpush1.msra.mxu0 0.0
    %507 = vmatprep.subr.mxu0 0.0
    %508 = vmatpush1.msra.mxu0 0.0
    %509 = vmatprep.subr.mxu0 0.0
    %510 = vmatpush1.msra.mxu0 0.0
    %511 = vmatprep.subr.mxu0 0.0
    %512 = vmatpush1.msra.mxu0 0.0
    %513 = vmatprep.subr.mxu0 0.0
    %514 = vmatpush1.msra.mxu0 0.0
    %515 = vmatprep.subr.mxu0 0.0
    %516 = vmatpush1.msra.mxu0 0.0
    %517 = vmatprep.subr.mxu0 0.0
    %518 = vmatpush1.msra.mxu0 0.0
    %519 = vmatprep.subr.mxu0 0.0
    %520 = vmatpush1.msra.mxu0 0.0
    %521 = vmatprep.subr.mxu0 0.0
    %522 = vmatpush1.msra.mxu0 0.0
    %523 = vmatprep.subr.mxu0 0.0
    %524 = vmatpush1.msra.mxu0 0.0
    %525 = vmatprep.subr.mxu0 0.0
    %526 = vmatpush1.msra.mxu0 0.0
    %527 = vmatprep.subr.mxu0 0.0
    %528 = vmatpush1.msra.mxu0 0.0
    %529 = vmatprep.subr.mxu0 0.0
    %530 = vmatpush1.msra.mxu0 0.0
    %531 = vmatprep.subr.mxu0 0.0
    %532 = vmatpush1.msra.mxu0 0.0
    %533 = vmatprep.subr.mxu0 0.0
    %534 = vmatpush1.msra.mxu0 0.0
    %535 = vmatprep.subr.mxu0 0.0
    %536 = vmatpush1.msra.mxu0 0.0
    %537 = vmatprep.subr.mxu0 0.0
    %538 = vmatpush1.msra.mxu0 0.0
    %539 = vmatprep.mubr.f32.mxu0 0.0
    %540 = vmatmul.mubr.f32.gmra.mrb[0].mxu0 %v306
    %v541 = vpop.f32.mrb[0].mxu0
    %v542 = vadd.f32 %v283, %v541
    %v543 = vpop.f32.mrb[0].mxu0
    %v544 = vadd.f32 %v287, %v543
    %545 = vdwg.mxu0
    %546 = vmatprep.subr.mxu0 %v173
    %547 = vmatpush1.msra.mxu0 %v172
    %548 = vmatprep.subr.mxu0 %v181
    %549 = vmatpush1.msra.mxu0 %v180
    %550 = vmatprep.subr.mxu0 %v189
    %551 = vmatpush1.msra.mxu0 %v188
    %552 = vmatprep.subr.mxu0 %v197
    %553 = vmatpush1.msra.mxu0 %v196
    %554 = vmatprep.subr.mxu0 %v205
    %555 = vmatpush1.msra.mxu0 %v204
    %556 = vmatprep.subr.mxu0 %v213
    %557 = vmatpush1.msra.mxu0 %v212
    %558 = vmatprep.subr.mxu0 %v221
    %559 = vmatpush1.msra.mxu0 %v220
    %560 = vmatprep.subr.mxu0 %v229
    %561 = vmatpush1.msra.mxu0 %v228
    %562 = vmatprep.subr.mxu0 %v237
    %563 = vmatpush1.msra.mxu0 %v236
    %564 = vmatprep.subr.mxu0 %v245
    %565 = vmatpush1.msra.mxu0 %v244
    %566 = vmatprep.subr.mxu0 %v253
    %567 = vmatpush1.msra.mxu0 %v252
    %568 = vmatprep.subr.mxu0 %v331
    %569 = vmatpush1.msra.mxu0 %v328
    %570 = vmatprep.subr.mxu0 0.0
    %571 = vmatpush1.msra.mxu0 0.0
    %572 = vmatprep.subr.mxu0 0.0
    %573 = vmatpush1.msra.mxu0 0.0
    %574 = vmatprep.subr.mxu0 0.0
    %575 = vmatpush1.msra.mxu0 0.0
    %576 = vmatprep.subr.mxu0 0.0
    %577 = vmatpush1.msra.mxu0 0.0
    %578 = vmatprep.subr.mxu0 0.0
    %579 = vmatpush1.msra.mxu0 0.0
    %580 = vmatprep.subr.mxu0 0.0
    %581 = vmatpush1.msra.mxu0 0.0
    %582 = vmatprep.subr.mxu0 0.0
    %583 = vmatpush1.msra.mxu0 0.0
    %584 = vmatprep.subr.mxu0 0.0
    %585 = vmatpush1.msra.mxu0 0.0
    %586 = vmatprep.subr.mxu0 0.0
    %587 = vmatpush1.msra.mxu0 0.0
    %588 = vmatprep.subr.mxu0 0.0
    %589 = vmatpush1.msra.mxu0 0.0
    %590 = vmatprep.subr.mxu0 0.0
    %591 = vmatpush1.msra.mxu0 0.0
    %592 = vmatprep.subr.mxu0 0.0
    %593 = vmatpush1.msra.mxu0 0.0
    %594 = vmatprep.subr.mxu0 0.0
    %595 = vmatpush1.msra.mxu0 0.0
    %596 = vmatprep.subr.mxu0 0.0
    %597 = vmatpush1.msra.mxu0 0.0
    %598 = vmatprep.subr.mxu0 0.0
    %599 = vmatpush1.msra.mxu0 0.0
    %600 = vmatprep.subr.mxu0 0.0
    %601 = vmatpush1.msra.mxu0 0.0
    %602 = vmatprep.subr.mxu0 0.0
    %603 = vmatpush1.msra.mxu0 0.0
    %604 = vmatprep.subr.mxu0 0.0
    %605 = vmatpush1.msra.mxu0 0.0
    %606 = vmatprep.subr.mxu0 0.0
    %607 = vmatpush1.msra.mxu0 0.0
    %608 = vmatprep.subr.mxu0 0.0
    %609 = vmatpush1.msra.mxu0 0.0
    %610 = vmatprep.mubr.f32.mxu0 0.0
    %611 = vmatmul.mubr.f32.gmra.mrb[0].mxu0 %v306
    %v612 = vpop.f32.mrb[0].mxu0
    %v613 = vadd.f32 %v291, %v612
    %v614 = vpop.f32.mrb[0].mxu0
    %v615 = vadd.f32 %v295, %v614
    %616 = vdwg.mxu0
    %v617 = vmax.f32 %v400, 0.0
    %v618 = vmax.f32 %v402, 0.0
    %v619 = vmax.f32 %v471, 0.0
    %v620 = vmax.f32 %v473, 0.0
    %v621 = vmax.f32 %v542, 0.0
    %v622 = vmax.f32 %v544, 0.0
    %v623 = vmax.f32 %v613, 0.0
    %v624 = vmax.f32 %v615, 0.0
    %v626 = vrot.slane %v618, 7
    %v629 = vrot.slane %v619, 6
    %v632 = vrot.slane %v620, 5
    %v635 = vrot.slane %v621, 4
    %v638 = vrot.slane %v622, 3
    %v641 = vrot.slane %v623, 2
    %v644 = vrot.slane %v624, 1
    %v647 = vrot.slane %v617, 1
    %v649 = vrot.slane %v619, 7
    %v651 = vrot.slane %v620, 6
    %v653 = vrot.slane %v621, 5
    %v655 = vrot.slane %v622, 4
    %v657 = vrot.slane %v623, 3
    %v659 = vrot.slane %v624, 2
    %vm661 = vcmask 1040384
    %v662 = vsel %vm661, %v617, %v626
    %vm663 = vcmask 1041408
    %v664 = vsel %vm663, %v662, %v629
    %vm665 = vcmask 1042432
    %v666 = vsel %vm665, %v664, %v632
    %v667 = vsel %vm308, %v666, %v635
    %vm668 = vcmask 1044480
    %v669 = vsel %vm668, %v667, %v638
    %vm670 = vcmask 1045504
    %v671 = vsel %vm670, %v669, %v641
    %vm672 = vcmask 1046528
    %v673 = vsel %vm672, %v671, %v644
    %v674 = vsel %vm661, %v647, %v618
    %v675 = vsel %vm663, %v674, %v649
    %v676 = vsel %vm665, %v675, %v651
    %v677 = vsel %vm308, %v676, %v653
    %v678 = vsel %vm668, %v677, %v655
    %v679 = vsel %vm670, %v678, %v657
    %v680 = vsel %vm672, %v679, %v659
    %v681 = vld [vmem:[#allocation2] sm:$0xff]
    %v682 = vld [vmem:[#allocation2 + $0x8] sm:$0xff]
    %v683 = vld [vmem:[#allocation5] sm:$0xff]
    %v684 = vld [vmem:[#allocation5 + $0x8] sm:$0xff]
    %v685 = vadd.f32 %v681, %v683
    %v686 = vadd.f32 %v682, %v684
    %v687 = vld [vmem:[%s12] sm:$0xff]
    %v688 = vld [vmem:[#allocation8] sm:$0xff]
    %v689 = vld [vmem:[#allocation8 + $0x8] sm:$0xff]
    %v690 = vld [vmem:[#allocation8 + $0x10] sm:$0xff]
    %v691 = vld [vmem:[#allocation8 + $0x18] sm:$0xff]
    %v692 = vld [vmem:[#allocation8 + $0x20] sm:$0xff]
    %v693 = vld [vmem:[#allocation8 + $0x28] sm:$0xff]
    %v694 = vld [vmem:[#allocation8 + $0x30] sm:$0xff]
    %v695 = vld [vmem:[#allocation8 + $0x38] sm:$0xff]
    %v696 = vld [vmem:[#allocation8 + $0x40] sm:$0xff]
    %v697 = vld [vmem:[#allocation8 + $0x48] sm:$0xff]
    %v698 = vld [vmem:[#allocation8 + $0x50] sm:$0xff]
    %v699 = vld [vmem:[#allocation8 + $0x58] sm:$0xff]
    %v700 = vld [vmem:[#allocation8 + $0x60] sm:$0xff]
    %v701 = vld [vmem:[#allocation8 + $0x68] sm:$0xff]
    %v702 = vld [vmem:[#allocation8 + $0x70] sm:$0xff]
    %v703 = vld [vmem:[#allocation8 + $0x78] sm:$0xff]
    %v704 = vlaneseq
    %v705 = vshrl.u32 %v704, 7
    %v706 = vsub.s32 0, %v705
    %v707 = vrot.slane %v687, %v706
    %708 = vmatprep.subr.mxu0 0.0
    %709 = vmatpush1.msra.mxu0 %v688
    %710 = vmatprep.subr.mxu0 0.0
    %711 = vmatpush1.msra.mxu0 %v689
    %712 = vmatprep.subr.mxu0 0.0
    %713 = vmatpush1.msra.mxu0 %v690
    %714 = vmatprep.subr.mxu0 0.0
    %715 = vmatpush1.msra.mxu0 %v691
    %716 = vmatprep.subr.mxu0 0.0
    %717 = vmatpush1.msra.mxu0 %v692
    %718 = vmatprep.subr.mxu0 0.0
    %719 = vmatpush1.msra.mxu0 %v693
    %720 = vmatprep.subr.mxu0 0.0
    %721 = vmatpush1.msra.mxu0 %v694
    %722 = vmatprep.subr.mxu0 0.0
    %723 = vmatpush1.msra.mxu0 %v695
    %724 = vmatprep.subr.mxu0 0.0
    %725 = vmatpush1.msra.mxu0 %v696
    %726 = vmatprep.subr.mxu0 0.0
    %727 = vmatpush1.msra.mxu0 %v697
    %728 = vmatprep.subr.mxu0 0.0
    %729 = vmatpush1.msra.mxu0 %v698
    %730 = vmatprep.subr.mxu0 0.0
    %731 = vmatpush1.msra.mxu0 %v699
    %732 = vmatprep.subr.mxu0 0.0
    %733 = vmatpush1.msra.mxu0 %v700
    %734 = vmatprep.subr.mxu0 0.0
    %735 = vmatpush1.msra.mxu0 %v701
    %736 = vmatprep.subr.mxu0 0.0
    %737 = vmatpush1.msra.mxu0 %v702
    %738 = vmatprep.subr.mxu0 0.0
    %739 = vmatpush1.msra.mxu0 %v703
    %740 = vmatprep.subr.mxu0 0.0
    %741 = vmatpush1.msra.mxu0 0.0
    %742 = vmatprep.subr.mxu0 0.0
    %743 = vmatpush1.msra.mxu0 0.0
    %744 = vmatprep.subr.mxu0 0.0
    %745 = vmatpush1.msra.mxu0 0.0
    %746 = vmatprep.subr.mxu0 0.0
    %747 = vmatpush1.msra.mxu0 0.0
    %748 = vmatprep.subr.mxu0 0.0
    %749 = vmatpush1.msra.mxu0 0.0
    %750 = vmatprep.subr.mxu0 0.0
    %751 = vmatpush1.msra.mxu0 0.0
    %752 = vmatprep.subr.mxu0 0.0
    %753 = vmatpush1.msra.mxu0 0.0
    %754 = vmatprep.subr.mxu0 0.0
    %755 = vmatpush1.msra.mxu0 0.0
    %756 = vmatprep.subr.mxu0 0.0
    %757 = vmatpush1.msra.mxu0 0.0
    %758 = vmatprep.subr.mxu0 0.0
    %759 = vmatpush1.msra.mxu0 0.0
    %760 = vmatprep.subr.mxu0 0.0
    %761 = vmatpush1.msra.mxu0 0.0
    %762 = vmatprep.subr.mxu0 0.0
    %763 = vmatpush1.msra.mxu0 0.0
    %764 = vmatprep.subr.mxu0 0.0
    %765 = vmatpush1.msra.mxu0 0.0
    %766 = vmatprep.subr.mxu0 0.0
    %767 = vmatpush1.msra.mxu0 0.0
    %768 = vmatprep.subr.mxu0 0.0
    %769 = vmatpush1.msra.mxu0 0.0
    %770 = vmatprep.subr.mxu0 0.0
    %771 = vmatpush1.msra.mxu0 0.0
    %772 = vmatprep.mubr.f32.mxu0 0.0
    %773 = vmatmul.mubr.f32.gmra.mrb[0].mxu0 %v673
    %v774 = vpop.f32.mrb[0].mxu0
    %v775 = vadd.f32 %v707, %v774
    %v776 = vpop.f32.mrb[0].mxu0
    %777 = vmatprep.mubr.f32.mxu0 0.0
    %778 = vmatmul.mubr.f32.gmra.mrb[0].mxu0 %v680
    %v779 = vpop.f32.mrb[0].mxu0
    %v780 = vadd.f32 %v707, %v779
    %v781 = vpop.f32.mrb[0].mxu0
    %782 = vdwg.mxu0
    %v783 = vld [vmem:[#allocation10] sm:$0xff]
    %v784 = vld [vmem:[#allocation10 + $0x8] sm:$0xff]
    %v785 = vld [vmem:[#allocation10 + $0x10] sm:$0xff]
    %v786 = vld [vmem:[#allocation10 + $0x18] sm:$0xff]
    %v787 = vld [vmem:[#allocation10 + $0x20] sm:$0xff]
    %v788 = vld [vmem:[#allocation10 + $0x28] sm:$0xff]
    %v789 = vld [vmem:[#allocation10 + $0x30] sm:$0xff]
    %v790 = vld [vmem:[#allocation10 + $0x38] sm:$0xff]
    %v791 = vld [vmem:[#allocation10 + $0x40] sm:$0xff]
    %v792 = vld [vmem:[#allocation10 + $0x48] sm:$0xff]
    %v793 = vld [vmem:[#allocation10 + $0x50] sm:$0xff]
    %v794 = vld [vmem:[#allocation10 + $0x58] sm:$0xff]
    %v795 = vld [vmem:[#allocation10 + $0x60] sm:$0xff]
    %v796 = vld [vmem:[#allocation10 + $0x68] sm:$0xff]
    %v797 = vld [vmem:[#allocation10 + $0x70] sm:$0xff]
    %v798 = vld [vmem:[#allocation10 + $0x78] sm:$0xff]
    %v799 = vld [vmem:[#allocation10 + $0x80] sm:$0xff]
    %v800 = vld [vmem:[#allocation10 + $0x88] sm:$0xff]
    %v801 = vld [vmem:[#allocation10 + $0x90] sm:$0xff]
    %v802 = vld [vmem:[#allocation10 + $0x98] sm:$0xff]
    %v803 = vld [vmem:[#allocation10 + $0xa0] sm:$0xff]
    %v804 = vld [vmem:[#allocation10 + $0xa8] sm:$0xff]
    %v805 = vld [vmem:[#allocation10 + $0xb0] sm:$0xff]
    %v806 = vld [vmem:[#allocation10 + $0xb8] sm:$0xff]
    %v807 = vld [vmem:[#allocation10 + $0xc0] sm:$0xff]
    %v808 = vld [vmem:[#allocation10 + $0xc8] sm:$0xff]
    %v809 = vld [vmem:[#allocation10 + $0xd0] sm:$0xff]
    %v810 = vld [vmem:[#allocation10 + $0xd8] sm:$0xff]
    %v811 = vld [vmem:[#allocation10 + $0xe0] sm:$0xff]
    %v812 = vld [vmem:[#allocation10 + $0xe8] sm:$0xff]
    %v813 = vld [vmem:[#allocation10 + $0xf0] sm:$0xff]
    %v814 = vld [vmem:[#allocation10 + $0xf8] sm:$0xff]
    %v815 = vld [vmem:[%s7] sm:$0x3]
    %v817 = vlaneseq
    %v818 = vshrl.u32 %v817, 7
    %v819 = vsub.s32 0, %v818
    %v820 = vrot.slane %v815, %v819
    %v821 = vlaneseq
    %v822 = vshrl.u32 %v821, 7
    %v823 = vsub.s32 1, %v822
    %v824 = vrot.slane %v815, %v823
    %827 = vmatprep.subr.mxu0 %v784
    %828 = vmatpush1.msra.mxu0 %v783
    %829 = vmatprep.subr.mxu0 %v786
    %830 = vmatpush1.msra.mxu0 %v785
    %831 = vmatprep.subr.mxu0 %v788
    %832 = vmatpush1.msra.mxu0 %v787
    %833 = vmatprep.subr.mxu0 %v790
    %834 = vmatpush1.msra.mxu0 %v789
    %835 = vmatprep.subr.mxu0 %v792
    %836 = vmatpush1.msra.mxu0 %v791
    %837 = vmatprep.subr.mxu0 %v794
    %838 = vmatpush1.msra.mxu0 %v793
    %839 = vmatprep.subr.mxu0 %v796
    %840 = vmatpush1.msra.mxu0 %v795
    %841 = vmatprep.subr.mxu0 %v798
    %842 = vmatpush1.msra.mxu0 %v797
    %843 = vmatprep.subr.mxu0 %v800
    %844 = vmatpush1.msra.mxu0 %v799
    %845 = vmatprep.subr.mxu0 %v802
    %846 = vmatpush1.msra.mxu0 %v801
    %847 = vmatprep.subr.mxu0 %v804
    %848 = vmatpush1.msra.mxu0 %v803
    %849 = vmatprep.subr.mxu0 %v806
    %850 = vmatpush1.msra.mxu0 %v805
    %851 = vmatprep.subr.mxu0 %v808
    %852 = vmatpush1.msra.mxu0 %v807
    %853 = vmatprep.subr.mxu0 %v810
    %854 = vmatpush1.msra.mxu0 %v809
    %855 = vmatprep.subr.mxu0 %v812
    %856 = vmatpush1.msra.mxu0 %v811
    %857 = vmatprep.subr.mxu0 %v814
    %858 = vmatpush1.msra.mxu0 %v813
    %859 = vmatprep.subr.mxu0 0.0
    %860 = vmatpush1.msra.mxu0 0.0
    %861 = vmatprep.subr.mxu0 0.0
    %862 = vmatpush1.msra.mxu0 0.0
    %863 = vmatprep.subr.mxu0 0.0
    %864 = vmatpush1.msra.mxu0 0.0
    %865 = vmatprep.subr.mxu0 0.0
    %866 = vmatpush1.msra.mxu0 0.0
    %867 = vmatprep.subr.mxu0 0.0
    %868 = vmatpush1.msra.mxu0 0.0
    %869 = vmatprep.subr.mxu0 0.0
    %870 = vmatpush1.msra.mxu0 0.0
    %871 = vmatprep.subr.mxu0 0.0
    %872 = vmatpush1.msra.mxu0 0.0
    %873 = vmatprep.subr.mxu0 0.0
    %874 = vmatpush1.msra.mxu0 0.0
    %875 = vmatprep.subr.mxu0 0.0
    %876 = vmatpush1.msra.mxu0 0.0
    %877 = vmatprep.subr.mxu0 0.0
    %878 = vmatpush1.msra.mxu0 0.0
    %879 = vmatprep.subr.mxu0 0.0
    %880 = vmatpush1.msra.mxu0 0.0
    %881 = vmatprep.subr.mxu0 0.0
    %882 = vmatpush1.msra.mxu0 0.0
    %883 = vmatprep.subr.mxu0 0.0
    %884 = vmatpush1.msra.mxu0 0.0
    %885 = vmatprep.subr.mxu0 0.0
    %886 = vmatpush1.msra.mxu0 0.0
    %887 = vmatprep.subr.mxu0 0.0
    %888 = vmatpush1.msra.mxu0 0.0
    %889 = vmatprep.subr.mxu0 0.0
    %890 = vmatpush1.msra.mxu0 0.0
    %891 = vmatprep.mubr.f32.mxu0 0.0
    %892 = vmatmul.mubr.f32.gmra.mrb[0].mxu0 %v685
    %v893 = vpop.f32.mrb[0].mxu0
    %v894 = vadd.f32 %v820, %v893
    %v895 = vpop.f32.mrb[0].mxu0
    %v896 = vadd.f32 %v824, %v895
    %897 = vmatprep.mubr.f32.mxu0 0.0
    %898 = vmatmul.mubr.f32.gmra.mrb[0].mxu0 %v686
    %v899 = vpop.f32.mrb[0].mxu0
    %v900 = vadd.f32 %v820, %v899
    %v901 = vpop.f32.mrb[0].mxu0
    %v902 = vadd.f32 %v824, %v901
    %903 = vdwg.mxu0
    %v904 = vlaneseq
    %v905 = vshrl.u32 %v904, 7
    %v906 = vadd.s32 %v905, 8
    %vm907 = vcmp.lt.s32.totalorder %v905, 0
    %v908 = vsub.s32 0, %v905
    %v909 = vsel %vm907, %v908, %v905
    %v910 = vshrl.u32 %v909, 1
    %v911 = vand.u32 %v909, 1
    %v912 = vsub.s32 0, %v911
    %v913 = vsel %vm907, %v912, %v911
    %vm914 = vcmp.lt.s32.totalorder %v906, 0
    %v915 = vsub.s32 0, %v906
    %v916 = vsel %vm914, %v915, %v906
    %v917 = vshrl.u32 %v916, 1
    %v918 = vand.u32 %v916, 1
    %v919 = vsub.s32 0, %v918
    %v920 = vsel %vm914, %v919, %v918
    %vm921 = vcmp.ne.s32.totalorder %v913, 0
    %vm922 = vcmp.ne.s32.totalorder %v920, 0
    %vm923 = vcmp.lt.s32.totalorder %v913, 0
    %vm924 = vcmp.lt.s32.totalorder %v920, 0
    %vm925 = vmand %vm923, %vm921
    %vm926 = vmand %vm924, %vm922
    %v927 = vadd.s32 %v913, 2
    %v928 = vadd.s32 %v920, 2
    %v929 = vsel %vm925, %v927, %v913
    %v930 = vsel %vm926, %v928, %v920
    %v931 = vlaneseq
    %v932 = vand.u32 %v931, 127
    %vm933 = vcmp.lt.s32.totalorder %v932, 0
    %v934 = vsub.s32 0, %v932
    %v935 = vsel %vm933, %v934, %v932
    %v936 = vshrl.u32 %v935, 1
    %v937 = vand.u32 %v935, 1
    %v938 = vsub.s32 0, %v937
    %v939 = vsel %vm933, %v938, %v937
    %vm940 = vcmp.ne.s32.totalorder %v939, 0
    %vm941 = vcmp.lt.s32.totalorder %v939, 0
    %vm942 = vmand %vm941, %vm940
    %v943 = vadd.s32 %v939, 2
    %v944 = vsel %vm942, %v943, %v939
    %vm945 = vcmp.eq.s32.totalorder %v929, %v944
    %vm946 = vcmp.eq.s32.totalorder %v930, %v944
    %v947 = vsel %vm945, 0.0, -1e+30
    %v948 = vsel %vm946, 0.0, -1e+30
    %vm949 = vcmask 261120
    %v951 = vsel %vm949, %v775, 0
    %v954 = vsel %vm949, %v780, 0
    %v957 = vsel %vm949, %v894, 0
    %v960 = vsel %vm949, %v900, 0
    %962 = vmatprep.subr.mxu0 0.0
    %963 = vmatpush1.xpose.msra.mxu0 %v957
    %964 = vmatprep.subr.mxu0 0.0
    %965 = vmatpush1.xpose.msra.mxu0 %v960
    %966 = vmatprep.subr.mxu0 0.0
    %967 = vmatpush1.xpose.msra.mxu0 0.0
    %968 = vmatprep.subr.mxu0 0.0
    %969 = vmatpush1.xpose.msra.mxu0 0.0
    %970 = vmatprep.subr.mxu0 0.0
    %971 = vmatpush1.xpose.msra.mxu0 0.0
    %972 = vmatprep.subr.mxu0 0.0
    %973 = vmatpush1.xpose.msra.mxu0 0.0
    %974 = vmatprep.subr.mxu0 0.0
    %975 = vmatpush1.xpose.msra.mxu0 0.0
    %976 = vmatprep.subr.mxu0 0.0
    %977 = vmatpush1.xpose.msra.mxu0 0.0
    %978 = vmatprep.subr.mxu0 0.0
    %979 = vmatpush1.xpose.msra.mxu0 0.0
    %980 = vmatprep.subr.mxu0 0.0
    %981 = vmatpush1.xpose.msra.mxu0 0.0
    %982 = vmatprep.subr.mxu0 0.0
    %983 = vmatpush1.xpose.msra.mxu0 0.0
    %984 = vmatprep.subr.mxu0 0.0
    %985 = vmatpush1.xpose.msra.mxu0 0.0
    %986 = vmatprep.subr.mxu0 0.0
    %987 = vmatpush1.xpose.msra.mxu0 0.0
    %988 = vmatprep.subr.mxu0 0.0
    %989 = vmatpush1.xpose.msra.mxu0 0.0
    %990 = vmatprep.subr.mxu0 0.0
    %991 = vmatpush1.xpose.msra.mxu0 0.0
    %992 = vmatprep.subr.mxu0 0.0
    %993 = vmatpush1.xpose.msra.mxu0 0.0
    %994 = vmatprep.subr.mxu0 0.0
    %995 = vmatpush1.xpose.msra.mxu0 0.0
    %996 = vmatprep.subr.mxu0 0.0
    %997 = vmatpush1.xpose.msra.mxu0 0.0
    %998 = vmatprep.subr.mxu0 0.0
    %999 = vmatpush1.xpose.msra.mxu0 0.0
    %1000 = vmatprep.subr.mxu0 0.0
    %1001 = vmatpush1.xpose.msra.mxu0 0.0
    %1002 = vmatprep.subr.mxu0 0.0
    %1003 = vmatpush1.xpose.msra.mxu0 0.0
    %1004 = vmatprep.subr.mxu0 0.0
    %1005 = vmatpush1.xpose.msra.mxu0 0.0
    %1006 = vmatprep.subr.mxu0 0.0
    %1007 = vmatpush1.xpose.msra.mxu0 0.0
    %1008 = vmatprep.subr.mxu0 0.0
    %1009 = vmatpush1.xpose.msra.mxu0 0.0
    %1010 = vmatprep.subr.mxu0 0.0
    %1011 = vmatpush1.xpose.msra.mxu0 0.0
    %1012 = vmatprep.subr.mxu0 0.0
    %1013 = vmatpush1.xpose.msra.mxu0 0.0
    %1014 = vmatprep.subr.mxu0 0.0
    %1015 = vmatpush1.xpose.msra.mxu0 0.0
    %1016 = vmatprep.subr.mxu0 0.0
    %1017 = vmatpush1.xpose.msra.mxu0 0.0
    %1018 = vmatprep.subr.mxu0 0.0
    %1019 = vmatpush1.xpose.msra.mxu0 0.0
    %1020 = vmatprep.subr.mxu0 0.0
    %1021 = vmatpush1.xpose.msra.mxu0 0.0
    %1022 = vmatprep.subr.mxu0 0.0
    %1023 = vmatpush1.xpose.msra.mxu0 0.0
    %1024 = vmatprep.subr.mxu0 0.0
    %1025 = vmatpush1.xpose.msra.mxu0 0.0
    %1026 = vmatprep.mubr.f32.mxu0 0.0
    %1027 = vmatmul.mubr.f32.gmra.mrb[0].mxu0 %v951
    %v1028 = vpop.f32.mrb[0].mxu0
    %v1029 = vadd.f32 %v947, %v1028
    %v1030 = vpop.f32.mrb[0].mxu0
    %1031 = vmatprep.mubr.f32.mxu0 0.0
    %1032 = vmatmul.mubr.f32.gmra.mrb[0].mxu0 %v954
    %v1033 = vpop.f32.mrb[0].mxu0
    %v1034 = vadd.f32 %v948, %v1033
    %v1035 = vpop.f32.mrb[0].mxu0
    %1036 = vdwg.mxu0
    %vm1037 = vcmask 130048
    %v1038 = vsel %vm1037, %v1029, -inf
    %1039 = vmax.xlane.f32.xlu0 %v1038
    %v1040 = vpop.xlane.xlu0 %1039
    %v1041 = vsel %vm1037, %v1034, -inf
    %1042 = vmax.xlane.f32.xlu0 %v1041
    %v1043 = vpop.xlane.xlu0 %1042
    %v1044 = vsub.f32 %v1029, %v1040
    %v1045 = vsub.f32 %v1034, %v1043
    %v1046 = vmul.f32 %v1044, 1.442695
    %v1047 = vpow.pop %v1046
    %v1048 = vmul.f32 %v1045, 1.442695
    %v1049 = vpow.pop %v1048
    %v1050 = vsel %vm1037, %v1047, 0.0
    %1051 = vadd.xlane.f32.xlu0 %v1050
    %v1052 = vpop.xlane.xlu0 %1051
    %v1053 = vsel %vm1037, %v1049, 0.0
    %1054 = vadd.xlane.f32.xlu0 %v1053
    %v1055 = vpop.xlane.xlu0 %1054
    %v1056 = vrcp.pop %v1052
    %v1057 = vrcp.pop %v1055
    %v1058 = vmul.f32 %v1047, %v1056
    %v1059 = vmul.f32 %v1049, %v1057
    %v1061 = vsel %vm1037, %v1058, 0
    %v1064 = vsel %vm1037, %v1059, 0
    %1066 = vmatprep.subr.mxu0 0.0
    %1067 = vmatpush1.msra.mxu0 %v896
    %1068 = vmatprep.subr.mxu0 0.0
    %1069 = vmatpush1.msra.mxu0 %v902
    %1070 = vmatprep.subr.mxu0 0.0
    %1071 = vmatpush1.msra.mxu0 0.0
    %1072 = vmatprep.subr.mxu0 0.0
    %1073 = vmatpush1.msra.mxu0 0.0
    %1074 = vmatprep.subr.mxu0 0.0
    %1075 = vmatpush1.msra.mxu0 0.0
    %1076 = vmatprep.subr.mxu0 0.0
    %1077 = vmatpush1.msra.mxu0 0.0
    %1078 = vmatprep.subr.mxu0 0.0
    %1079 = vmatpush1.msra.mxu0 0.0
    %1080 = vmatprep.subr.mxu0 0.0
    %1081 = vmatpush1.msra.mxu0 0.0
    %1082 = vmatprep.subr.mxu0 0.0
    %1083 = vmatpush1.msra.mxu0 0.0
    %1084 = vmatprep.subr.mxu0 0.0
    %1085 = vmatpush1.msra.mxu0 0.0
    %1086 = vmatprep.subr.mxu0 0.0
    %1087 = vmatpush1.msra.mxu0 0.0
    %1088 = vmatprep.subr.mxu0 0.0
    %1089 = vmatpush1.msra.mxu0 0.0
    %1090 = vmatprep.subr.mxu0 0.0
    %1091 = vmatpush1.msra.mxu0 0.0
    %1092 = vmatprep.subr.mxu0 0.0
    %1093 = vmatpush1.msra.mxu0 0.0
    %1094 = vmatprep.subr.mxu0 0.0
    %1095 = vmatpush1.msra.mxu0 0.0
    %1096 = vmatprep.subr.mxu0 0.0
    %1097 = vmatpush1.msra.mxu0 0.0
    %1098 = vmatprep.subr.mxu0 0.0
    %1099 = vmatpush1.msra.mxu0 0.0
    %1100 = vmatprep.subr.mxu0 0.0
    %1101 = vmatpush1.msra.mxu0 0.0
    %1102 = vmatprep.subr.mxu0 0.0
    %1103 = vmatpush1.msra.mxu0 0.0
    %1104 = vmatprep.subr.mxu0 0.0
    %1105 = vmatpush1.msra.mxu0 0.0
    %1106 = vmatprep.subr.mxu0 0.0
    %1107 = vmatpush1.msra.mxu0 0.0
    %1108 = vmatprep.subr.mxu0 0.0
    %1109 = vmatpush1.msra.mxu0 0.0
    %1110 = vmatprep.subr.mxu0 0.0
    %1111 = vmatpush1.msra.mxu0 0.0
    %1112 = vmatprep.subr.mxu0 0.0
    %1113 = vmatpush1.msra.mxu0 0.0
    %1114 = vmatprep.subr.mxu0 0.0
    %1115 = vmatpush1.msra.mxu0 0.0
    %1116 = vmatprep.subr.mxu0 0.0
    %1117 = vmatpush1.msra.mxu0 0.0
    %1118 = vmatprep.subr.mxu0 0.0
    %1119 = vmatpush1.msra.mxu0 0.0
    %1120 = vmatprep.subr.mxu0 0.0
    %1121 = vmatpush1.msra.mxu0 0.0
    %1122 = vmatprep.subr.mxu0 0.0
    %1123 = vmatpush1.msra.mxu0 0.0
    %1124 = vmatprep.subr.mxu0 0.0
    %1125 = vmatpush1.msra.mxu0 0.0
    %1126 = vmatprep.subr.mxu0 0.0
    %1127 = vmatpush1.msra.mxu0 0.0
    %1128 = vmatprep.subr.mxu0 0.0
    %1129 = vmatpush1.msra.mxu0 0.0
    %1130 = vmatprep.mubr.f32.mxu0 0.0
    %1131 = vmatmul.mubr.f32.gmra.mrb[0].mxu0 %v1061
    %v1132 = vpop.f32.mrb[0].mxu0
    %v1133 = vadd.f32 0.0, %v1132
    %v1134 = vpop.f32.mrb[0].mxu0
    %1135 = vmatprep.mubr.f32.mxu0 0.0
    %1136 = vmatmul.mubr.f32.gmra.mrb[0].mxu0 %v1064
    %v1137 = vpop.f32.mrb[0].mxu0
    %v1138 = vadd.f32 0.0, %v1137
    %v1139 = vpop.f32.mrb[0].mxu0
    %1140 = vdwg.mxu0
    %1141 = vrot.lane.b32.xlu0 %v775, 96
    %v1142 = vpop.permute.xlu0 %1141
    %1143 = vrot.lane.b32.xlu0 %v780, 96
    %v1144 = vpop.permute.xlu0 %1143
    %1145 = vrot.lane.b32.xlu0 %v894, 96
    %v1146 = vpop.permute.xlu0 %1145
    %1147 = vrot.lane.b32.xlu0 %v900, 96
    %v1148 = vpop.permute.xlu0 %1147
    %v1149 = vsel %vm949, %v1142, 0
    %v1151 = vsel %vm949, %v1144, 0
    %v1153 = vsel %vm949, %v1146, 0
    %v1155 = vsel %vm949, %v1148, 0
    %1157 = vmatprep.subr.mxu0 0.0
    %1158 = vmatpush1.xpose.msra.mxu0 %v1153
    %1159 = vmatprep.subr.mxu0 0.0
    %1160 = vmatpush1.xpose.msra.mxu0 %v1155
    %1161 = vmatprep.subr.mxu0 0.0
    %1162 = vmatpush1.xpose.msra.mxu0 0.0
    %1163 = vmatprep.subr.mxu0 0.0
    %1164 = vmatpush1.xpose.msra.mxu0 0.0
    %1165 = vmatprep.subr.mxu0 0.0
    %1166 = vmatpush1.xpose.msra.mxu0 0.0
    %1167 = vmatprep.subr.mxu0 0.0
    %1168 = vmatpush1.xpose.msra.mxu0 0.0
    %1169 = vmatprep.subr.mxu0 0.0
    %1170 = vmatpush1.xpose.msra.mxu0 0.0
    %1171 = vmatprep.subr.mxu0 0.0
    %1172 = vmatpush1.xpose.msra.mxu0 0.0
    %1173 = vmatprep.subr.mxu0 0.0
    %1174 = vmatpush1.xpose.msra.mxu0 0.0
    %1175 = vmatprep.subr.mxu0 0.0
    %1176 = vmatpush1.xpose.msra.mxu0 0.0
    %1177 = vmatprep.subr.mxu0 0.0
    %1178 = vmatpush1.xpose.msra.mxu0 0.0
    %1179 = vmatprep.subr.mxu0 0.0
    %1180 = vmatpush1.xpose.msra.mxu0 0.0
    %1181 = vmatprep.subr.mxu0 0.0
    %1182 = vmatpush1.xpose.msra.mxu0 0.0
    %1183 = vmatprep.subr.mxu0 0.0
    %1184 = vmatpush1.xpose.msra.mxu0 0.0
    %1185 = vmatprep.subr.mxu0 0.0
    %1186 = vmatpush1.xpose.msra.mxu0 0.0
    %1187 = vmatprep.subr.mxu0 0.0
    %1188 = vmatpush1.xpose.msra.mxu0 0.0
    %1189 = vmatprep.subr.mxu0 0.0
    %1190 = vmatpush1.xpose.msra.mxu0 0.0
    %1191 = vmatprep.subr.mxu0 0.0
    %1192 = vmatpush1.xpose.msra.mxu0 0.0
    %1193 = vmatprep.subr.mxu0 0.0
    %1194 = vmatpush1.xpose.msra.mxu0 0.0
    %1195 = vmatprep.subr.mxu0 0.0
    %1196 = vmatpush1.xpose.msra.mxu0 0.0
    %1197 = vmatprep.subr.mxu0 0.0
    %1198 = vmatpush1.xpose.msra.mxu0 0.0
    %1199 = vmatprep.subr.mxu0 0.0
    %1200 = vmatpush1.xpose.msra.mxu0 0.0
    %1201 = vmatprep.subr.mxu0 0.0
    %1202 = vmatpush1.xpose.msra.mxu0 0.0
    %1203 = vmatprep.subr.mxu0 0.0
    %1204 = vmatpush1.xpose.msra.mxu0 0.0
    %1205 = vmatprep.subr.mxu0 0.0
    %1206 = vmatpush1.xpose.msra.mxu0 0.0
    %1207 = vmatprep.subr.mxu0 0.0
    %1208 = vmatpush1.xpose.msra.mxu0 0.0
    %1209 = vmatprep.subr.mxu0 0.0
    %1210 = vmatpush1.xpose.msra.mxu0 0.0
    %1211 = vmatprep.subr.mxu0 0.0
    %1212 = vmatpush1.xpose.msra.mxu0 0.0
    %1213 = vmatprep.subr.mxu0 0.0
    %1214 = vmatpush1.xpose.msra.mxu0 0.0
    %1215 = vmatprep.subr.mxu0 0.0
    %1216 = vmatpush1.xpose.msra.mxu0 0.0
    %1217 = vmatprep.subr.mxu0 0.0
    %1218 = vmatpush1.xpose.msra.mxu0 0.0
    %1219 = vmatprep.subr.mxu0 0.0
    %1220 = vmatpush1.xpose.msra.mxu0 0.0
    %1221 = vmatprep.mubr.f32.mxu0 0.0
    %1222 = vmatmul.mubr.f32.gmra.mrb[0].mxu0 %v1149
    %v1223 = vpop.f32.mrb[0].mxu0
    %v1224 = vadd.f32 %v947, %v1223
    %v1225 = vpop.f32.mrb[0].mxu0
    %1226 = vmatprep.mubr.f32.mxu0 0.0
    %1227 = vmatmul.mubr.f32.gmra.mrb[0].mxu0 %v1151
    %v1228 = vpop.f32.mrb[0].mxu0
    %v1229 = vadd.f32 %v948, %v1228
    %v1230 = vpop.f32.mrb[0].mxu0
    %1231 = vdwg.mxu0
    %v1232 = vsel %vm1037, %v1224, -inf
    %1233 = vmax.xlane.f32.xlu0 %v1232
    %v1234 = vpop.xlane.xlu0 %1233
    %v1235 = vsel %vm1037, %v1229, -inf
    %1236 = vmax.xlane.f32.xlu0 %v1235
    %v1237 = vpop.xlane.xlu0 %1236
    %v1238 = vsub.f32 %v1224, %v1234
    %v1239 = vsub.f32 %v1229, %v1237
    %v1240 = vmul.f32 %v1238, 1.442695
    %v1241 = vpow.pop %v1240
    %v1242 = vmul.f32 %v1239, 1.442695
    %v1243 = vpow.pop %v1242
    %v1244 = vsel %vm1037, %v1241, 0.0
    %1245 = vadd.xlane.f32.xlu0 %v1244
    %v1246 = vpop.xlane.xlu0 %1245
    %v1247 = vsel %vm1037, %v1243, 0.0
    %1248 = vadd.xlane.f32.xlu0 %v1247
    %v1249 = vpop.xlane.xlu0 %1248
    %v1250 = vrcp.pop %v1246
    %v1251 = vrcp.pop %v1249
    %v1252 = vmul.f32 %v1241, %v1250
    %v1253 = vmul.f32 %v1243, %v1251
    %1256 = vrot.lane.b32.xlu0 %v896, 96
    %v1257 = vpop.permute.xlu0 %1256
    %1258 = vrot.lane.b32.xlu0 %v902, 96
    %v1259 = vpop.permute.xlu0 %1258
    %v1263 = vsel %vm1037, %v1252, 0
    %v1266 = vsel %vm1037, %v1253, 0
    %1268 = vmatprep.subr.mxu0 0.0
    %1269 = vmatpush1.msra.mxu0 %v1257
    %1270 = vmatprep.subr.mxu0 0.0
    %1271 = vmatpush1.msra.mxu0 %v1259
    %1272 = vmatprep.subr.mxu0 0.0
    %1273 = vmatpush1.msra.mxu0 0.0
    %1274 = vmatprep.subr.mxu0 0.0
    %1275 = vmatpush1.msra.mxu0 0.0
    %1276 = vmatprep.subr.mxu0 0.0
    %1277 = vmatpush1.msra.mxu0 0.0
    %1278 = vmatprep.subr.mxu0 0.0
    %1279 = vmatpush1.msra.mxu0 0.0
    %1280 = vmatprep.subr.mxu0 0.0
    %1281 = vmatpush1.msra.mxu0 0.0
    %1282 = vmatprep.subr.mxu0 0.0
    %1283 = vmatpush1.msra.mxu0 0.0
    %1284 = vmatprep.subr.mxu0 0.0
    %1285 = vmatpush1.msra.mxu0 0.0
    %1286 = vmatprep.subr.mxu0 0.0
    %1287 = vmatpush1.msra.mxu0 0.0
    %1288 = vmatprep.subr.mxu0 0.0
    %1289 = vmatpush1.msra.mxu0 0.0
    %1290 = vmatprep.subr.mxu0 0.0
    %1291 = vmatpush1.msra.mxu0 0.0
    %1292 = vmatprep.subr.mxu0 0.0
    %1293 = vmatpush1.msra.mxu0 0.0
    %1294 = vmatprep.subr.mxu0 0.0
    %1295 = vmatpush1.msra.mxu0 0.0
    %1296 = vmatprep.subr.mxu0 0.0
    %1297 = vmatpush1.msra.mxu0 0.0
    %1298 = vmatprep.subr.mxu0 0.0
    %1299 = vmatpush1.msra.mxu0 0.0
    %1300 = vmatprep.subr.mxu0 0.0
    %1301 = vmatpush1.msra.mxu0 0.0
    %1302 = vmatprep.subr.mxu0 0.0
    %1303 = vmatpush1.msra.mxu0 0.0
    %1304 = vmatprep.subr.mxu0 0.0
    %1305 = vmatpush1.msra.mxu0 0.0
    %1306 = vmatprep.subr.mxu0 0.0
    %1307 = vmatpush1.msra.mxu0 0.0
    %1308 = vmatprep.subr.mxu0 0.0
    %1309 = vmatpush1.msra.mxu0 0.0
    %1310 = vmatprep.subr.mxu0 0.0
    %1311 = vmatpush1.msra.mxu0 0.0
    %1312 = vmatprep.subr.mxu0 0.0
    %1313 = vmatpush1.msra.mxu0 0.0
    %1314 = vmatprep.subr.mxu0 0.0
    %1315 = vmatpush1.msra.mxu0 0.0
    %1316 = vmatprep.subr.mxu0 0.0
    %1317 = vmatpush1.msra.mxu0 0.0
    %1318 = vmatprep.subr.mxu0 0.0
    %1319 = vmatpush1.msra.mxu0 0.0
    %1320 = vmatprep.subr.mxu0 0.0
    %1321 = vmatpush1.msra.mxu0 0.0
    %1322 = vmatprep.subr.mxu0 0.0
    %1323 = vmatpush1.msra.mxu0 0.0
    %1324 = vmatprep.subr.mxu0 0.0
    %1325 = vmatpush1.msra.mxu0 0.0
    %1326 = vmatprep.subr.mxu0 0.0
    %1327 = vmatpush1.msra.mxu0 0.0
    %1328 = vmatprep.subr.mxu0 0.0
    %1329 = vmatpush1.msra.mxu0 0.0
    %1330 = vmatprep.subr.mxu0 0.0
    %1331 = vmatpush1.msra.mxu0 0.0
    %1332 = vmatprep.mubr.f32.mxu0 0.0
    %1333 = vmatmul.mubr.f32.gmra.mrb[0].mxu0 %v1263
    %v1334 = vpop.f32.mrb[0].mxu0
    %v1335 = vadd.f32 0.0, %v1334
    %v1336 = vpop.f32.mrb[0].mxu0
    %1337 = vmatprep.mubr.f32.mxu0 0.0
    %1338 = vmatmul.mubr.f32.gmra.mrb[0].mxu0 %v1266
    %v1339 = vpop.f32.mrb[0].mxu0
    %v1340 = vadd.f32 0.0, %v1339
    %v1341 = vpop.f32.mrb[0].mxu0
    %1342 = vdwg.mxu0
    %1343 = vrot.lane.b32.xlu0 %v775, 64
    %v1344 = vpop.permute.xlu0 %1343
    %1345 = vrot.lane.b32.xlu0 %v780, 64
    %v1346 = vpop.permute.xlu0 %1345
    %1347 = vrot.lane.b32.xlu0 %v894, 64
    %v1348 = vpop.permute.xlu0 %1347
    %1349 = vrot.lane.b32.xlu0 %v900, 64
    %v1350 = vpop.permute.xlu0 %1349
    %v1351 = vsel %vm949, %v1344, 0
    %v1353 = vsel %vm949, %v1346, 0
    %v1355 = vsel %vm949, %v1348, 0
    %v1357 = vsel %vm949, %v1350, 0
    %1359 = vmatprep.subr.mxu0 0.0
    %1360 = vmatpush1.xpose.msra.mxu0 %v1355
    %1361 = vmatprep.subr.mxu0 0.0
    %1362 = vmatpush1.xpose.msra.mxu0 %v1357
    %1363 = vmatprep.subr.mxu0 0.0
    %1364 = vmatpush1.xpose.msra.mxu0 0.0
    %1365 = vmatprep.subr.mxu0 0.0
    %1366 = vmatpush1.xpose.msra.mxu0 0.0
    %1367 = vmatprep.subr.mxu0 0.0
    %1368 = vmatpush1.xpose.msra.mxu0 0.0
    %1369 = vmatprep.subr.mxu0 0.0
    %1370 = vmatpush1.xpose.msra.mxu0 0.0
    %1371 = vmatprep.subr.mxu0 0.0
    %1372 = vmatpush1.xpose.msra.mxu0 0.0
    %1373 = vmatprep.subr.mxu0 0.0
    %1374 = vmatpush1.xpose.msra.mxu0 0.0
    %1375 = vmatprep.subr.mxu0 0.0
    %1376 = vmatpush1.xpose.msra.mxu0 0.0
    %1377 = vmatprep.subr.mxu0 0.0
    %1378 = vmatpush1.xpose.msra.mxu0 0.0
    %1379 = vmatprep.subr.mxu0 0.0
    %1380 = vmatpush1.xpose.msra.mxu0 0.0
    %1381 = vmatprep.subr.mxu0 0.0
    %1382 = vmatpush1.xpose.msra.mxu0 0.0
    %1383 = vmatprep.subr.mxu0 0.0
    %1384 = vmatpush1.xpose.msra.mxu0 0.0
    %1385 = vmatprep.subr.mxu0 0.0
    %1386 = vmatpush1.xpose.msra.mxu0 0.0
    %1387 = vmatprep.subr.mxu0 0.0
    %1388 = vmatpush1.xpose.msra.mxu0 0.0
    %1389 = vmatprep.subr.mxu0 0.0
    %1390 = vmatpush1.xpose.msra.mxu0 0.0
    %1391 = vmatprep.subr.mxu0 0.0
    %1392 = vmatpush1.xpose.msra.mxu0 0.0
    %1393 = vmatprep.subr.mxu0 0.0
    %1394 = vmatpush1.xpose.msra.mxu0 0.0
    %1395 = vmatprep.subr.mxu0 0.0
    %1396 = vmatpush1.xpose.msra.mxu0 0.0
    %1397 = vmatprep.subr.mxu0 0.0
    %1398 = vmatpush1.xpose.msra.mxu0 0.0
    %1399 = vmatprep.subr.mxu0 0.0
    %1400 = vmatpush1.xpose.msra.mxu0 0.0
    %1401 = vmatprep.subr.mxu0 0.0
    %1402 = vmatpush1.xpose.msra.mxu0 0.0
    %1403 = vmatprep.subr.mxu0 0.0
    %1404 = vmatpush1.xpose.msra.mxu0 0.0
    %1405 = vmatprep.subr.mxu0 0.0
    %1406 = vmatpush1.xpose.msra.mxu0 0.0
    %1407 = vmatprep.subr.mxu0 0.0
    %1408 = vmatpush1.xpose.msra.mxu0 0.0
    %1409 = vmatprep.subr.mxu0 0.0
    %1410 = vmatpush1.xpose.msra.mxu0 0.0
    %1411 = vmatprep.subr.mxu0 0.0
    %1412 = vmatpush1.xpose.msra.mxu0 0.0
    %1413 = vmatprep.subr.mxu0 0.0
    %1414 = vmatpush1.xpose.msra.mxu0 0.0
    %1415 = vmatprep.subr.mxu0 0.0
    %1416 = vmatpush1.xpose.msra.mxu0 0.0
    %1417 = vmatprep.subr.mxu0 0.0
    %1418 = vmatpush1.xpose.msra.mxu0 0.0
    %1419 = vmatprep.subr.mxu0 0.0
    %1420 = vmatpush1.xpose.msra.mxu0 0.0
    %1421 = vmatprep.subr.mxu0 0.0
    %1422 = vmatpush1.xpose.msra.mxu0 0.0
    %1423 = vmatprep.mubr.f32.mxu0 0.0
    %1424 = vmatmul.mubr.f32.gmra.mrb[0].mxu0 %v1351
    %v1425 = vpop.f32.mrb[0].mxu0
    %v1426 = vadd.f32 %v947, %v1425
    %v1427 = vpop.f32.mrb[0].mxu0
    %1428 = vmatprep.mubr.f32.mxu0 0.0
    %1429 = vmatmul.mubr.f32.gmra.mrb[0].mxu0 %v1353
    %v1430 = vpop.f32.mrb[0].mxu0
    %v1431 = vadd.f32 %v948, %v1430
    %v1432 = vpop.f32.mrb[0].mxu0
    %1433 = vdwg.mxu0
    %v1434 = vsel %vm1037, %v1426, -inf
    %1435 = vmax.xlane.f32.xlu0 %v1434
    %v1436 = vpop.xlane.xlu0 %1435
    %v1437 = vsel %vm1037, %v1431, -inf
    %1438 = vmax.xlane.f32.xlu0 %v1437
    %v1439 = vpop.xlane.xlu0 %1438
    %v1440 = vsub.f32 %v1426, %v1436
    %v1441 = vsub.f32 %v1431, %v1439
    %v1442 = vmul.f32 %v1440, 1.442695
    %v1443 = vpow.pop %v1442
    %v1444 = vmul.f32 %v1441, 1.442695
    %v1445 = vpow.pop %v1444
    %v1446 = vsel %vm1037, %v1443, 0.0
    %1447 = vadd.xlane.f32.xlu0 %v1446
    %v1448 = vpop.xlane.xlu0 %1447
    %v1449 = vsel %vm1037, %v1445, 0.0
    %1450 = vadd.xlane.f32.xlu0 %v1449
    %v1451 = vpop.xlane.xlu0 %1450
    %v1452 = vrcp.pop %v1448
    %v1453 = vrcp.pop %v1451
    %v1454 = vmul.f32 %v1443, %v1452
    %v1455 = vmul.f32 %v1445, %v1453
    %1456 = vrot.lane.b32.xlu0 %v896, 64
    %v1457 = vpop.permute.xlu0 %1456
    %1458 = vrot.lane.b32.xlu0 %v902, 64
    %v1459 = vpop.permute.xlu0 %1458
    %v1463 = vsel %vm1037, %v1454, 0
    %v1466 = vsel %vm1037, %v1455, 0
    %1468 = vmatprep.subr.mxu0 0.0
    %1469 = vmatpush1.msra.mxu0 %v1457
    %1470 = vmatprep.subr.mxu0 0.0
    %1471 = vmatpush1.msra.mxu0 %v1459
    %1472 = vmatprep.subr.mxu0 0.0
    %1473 = vmatpush1.msra.mxu0 0.0
    %1474 = vmatprep.subr.mxu0 0.0
    %1475 = vmatpush1.msra.mxu0 0.0
    %1476 = vmatprep.subr.mxu0 0.0
    %1477 = vmatpush1.msra.mxu0 0.0
    %1478 = vmatprep.subr.mxu0 0.0
    %1479 = vmatpush1.msra.mxu0 0.0
    %1480 = vmatprep.subr.mxu0 0.0
    %1481 = vmatpush1.msra.mxu0 0.0
    %1482 = vmatprep.subr.mxu0 0.0
    %1483 = vmatpush1.msra.mxu0 0.0
    %1484 = vmatprep.subr.mxu0 0.0
    %1485 = vmatpush1.msra.mxu0 0.0
    %1486 = vmatprep.subr.mxu0 0.0
    %1487 = vmatpush1.msra.mxu0 0.0
    %1488 = vmatprep.subr.mxu0 0.0
    %1489 = vmatpush1.msra.mxu0 0.0
    %1490 = vmatprep.subr.mxu0 0.0
    %1491 = vmatpush1.msra.mxu0 0.0
    %1492 = vmatprep.subr.mxu0 0.0
    %1493 = vmatpush1.msra.mxu0 0.0
    %1494 = vmatprep.subr.mxu0 0.0
    %1495 = vmatpush1.msra.mxu0 0.0
    %1496 = vmatprep.subr.mxu0 0.0
    %1497 = vmatpush1.msra.mxu0 0.0
    %1498 = vmatprep.subr.mxu0 0.0
    %1499 = vmatpush1.msra.mxu0 0.0
    %1500 = vmatprep.subr.mxu0 0.0
    %1501 = vmatpush1.msra.mxu0 0.0
    %1502 = vmatprep.subr.mxu0 0.0
    %1503 = vmatpush1.msra.mxu0 0.0
    %1504 = vmatprep.subr.mxu0 0.0
    %1505 = vmatpush1.msra.mxu0 0.0
    %1506 = vmatprep.subr.mxu0 0.0
    %1507 = vmatpush1.msra.mxu0 0.0
    %1508 = vmatprep.subr.mxu0 0.0
    %1509 = vmatpush1.msra.mxu0 0.0
    %1510 = vmatprep.subr.mxu0 0.0
    %1511 = vmatpush1.msra.mxu0 0.0
    %1512 = vmatprep.subr.mxu0 0.0
    %1513 = vmatpush1.msra.mxu0 0.0
    %1514 = vmatprep.subr.mxu0 0.0
    %1515 = vmatpush1.msra.mxu0 0.0
    %1516 = vmatprep.subr.mxu0 0.0
    %1517 = vmatpush1.msra.mxu0 0.0
    %1518 = vmatprep.subr.mxu0 0.0
    %1519 = vmatpush1.msra.mxu0 0.0
    %1520 = vmatprep.subr.mxu0 0.0
    %1521 = vmatpush1.msra.mxu0 0.0
    %1522 = vmatprep.subr.mxu0 0.0
    %1523 = vmatpush1.msra.mxu0 0.0
    %1524 = vmatprep.subr.mxu0 0.0
    %1525 = vmatpush1.msra.mxu0 0.0
    %1526 = vmatprep.subr.mxu0 0.0
    %1527 = vmatpush1.msra.mxu0 0.0
    %1528 = vmatprep.subr.mxu0 0.0
    %1529 = vmatpush1.msra.mxu0 0.0
    %1530 = vmatprep.subr.mxu0 0.0
    %1531 = vmatpush1.msra.mxu0 0.0
    %1532 = vmatprep.mubr.f32.mxu0 0.0
    %1533 = vmatmul.mubr.f32.gmra.mrb[0].mxu0 %v1463
    %v1534 = vpop.f32.mrb[0].mxu0
    %v1535 = vadd.f32 0.0, %v1534
    %v1536 = vpop.f32.mrb[0].mxu0
    %1537 = vmatprep.mubr.f32.mxu0 0.0
    %1538 = vmatmul.mubr.f32.gmra.mrb[0].mxu0 %v1466
    %v1539 = vpop.f32.mrb[0].mxu0
    %v1540 = vadd.f32 0.0, %v1539
    %v1541 = vpop.f32.mrb[0].mxu0
    %1542 = vdwg.mxu0
    %1543 = vrot.lane.b32.xlu0 %v775, 32
    %v1544 = vpop.permute.xlu0 %1543
    %1545 = vrot.lane.b32.xlu0 %v780, 32
    %v1546 = vpop.permute.xlu0 %1545
    %1547 = vrot.lane.b32.xlu0 %v894, 32
    %v1548 = vpop.permute.xlu0 %1547
    %1549 = vrot.lane.b32.xlu0 %v900, 32
    %v1550 = vpop.permute.xlu0 %1549
    %v1551 = vsel %vm949, %v1544, 0
    %v1553 = vsel %vm949, %v1546, 0
    %v1555 = vsel %vm949, %v1548, 0
    %v1557 = vsel %vm949, %v1550, 0
    %1559 = vmatprep.subr.mxu0 0.0
    %1560 = vmatpush1.xpose.msra.mxu0 %v1555
    %1561 = vmatprep.subr.mxu0 0.0
    %1562 = vmatpush1.xpose.msra.mxu0 %v1557
    %1563 = vmatprep.subr.mxu0 0.0
    %1564 = vmatpush1.xpose.msra.mxu0 0.0
    %1565 = vmatprep.subr.mxu0 0.0
    %1566 = vmatpush1.xpose.msra.mxu0 0.0
    %1567 = vmatprep.subr.mxu0 0.0
    %1568 = vmatpush1.xpose.msra.mxu0 0.0
    %1569 = vmatprep.subr.mxu0 0.0
    %1570 = vmatpush1.xpose.msra.mxu0 0.0
    %1571 = vmatprep.subr.mxu0 0.0
    %1572 = vmatpush1.xpose.msra.mxu0 0.0
    %1573 = vmatprep.subr.mxu0 0.0
    %1574 = vmatpush1.xpose.msra.mxu0 0.0
    %1575 = vmatprep.subr.mxu0 0.0
    %1576 = vmatpush1.xpose.msra.mxu0 0.0
    %1577 = vmatprep.subr.mxu0 0.0
    %1578 = vmatpush1.xpose.msra.mxu0 0.0
    %1579 = vmatprep.subr.mxu0 0.0
    %1580 = vmatpush1.xpose.msra.mxu0 0.0
    %1581 = vmatprep.subr.mxu0 0.0
    %1582 = vmatpush1.xpose.msra.mxu0 0.0
    %1583 = vmatprep.subr.mxu0 0.0
    %1584 = vmatpush1.xpose.msra.mxu0 0.0
    %1585 = vmatprep.subr.mxu0 0.0
    %1586 = vmatpush1.xpose.msra.mxu0 0.0
    %1587 = vmatprep.subr.mxu0 0.0
    %1588 = vmatpush1.xpose.msra.mxu0 0.0
    %1589 = vmatprep.subr.mxu0 0.0
    %1590 = vmatpush1.xpose.msra.mxu0 0.0
    %1591 = vmatprep.subr.mxu0 0.0
    %1592 = vmatpush1.xpose.msra.mxu0 0.0
    %1593 = vmatprep.subr.mxu0 0.0
    %1594 = vmatpush1.xpose.msra.mxu0 0.0
    %1595 = vmatprep.subr.mxu0 0.0
    %1596 = vmatpush1.xpose.msra.mxu0 0.0
    %1597 = vmatprep.subr.mxu0 0.0
    %1598 = vmatpush1.xpose.msra.mxu0 0.0
    %1599 = vmatprep.subr.mxu0 0.0
    %1600 = vmatpush1.xpose.msra.mxu0 0.0
    %1601 = vmatprep.subr.mxu0 0.0
    %1602 = vmatpush1.xpose.msra.mxu0 0.0
    %1603 = vmatprep.subr.mxu0 0.0
    %1604 = vmatpush1.xpose.msra.mxu0 0.0
    %1605 = vmatprep.subr.mxu0 0.0
    %1606 = vmatpush1.xpose.msra.mxu0 0.0
    %1607 = vmatprep.subr.mxu0 0.0
    %1608 = vmatpush1.xpose.msra.mxu0 0.0
    %1609 = vmatprep.subr.mxu0 0.0
    %1610 = vmatpush1.xpose.msra.mxu0 0.0
    %1611 = vmatprep.subr.mxu0 0.0
    %1612 = vmatpush1.xpose.msra.mxu0 0.0
    %1613 = vmatprep.subr.mxu0 0.0
    %1614 = vmatpush1.xpose.msra.mxu0 0.0
    %1615 = vmatprep.subr.mxu0 0.0
    %1616 = vmatpush1.xpose.msra.mxu0 0.0
    %1617 = vmatprep.subr.mxu0 0.0
    %1618 = vmatpush1.xpose.msra.mxu0 0.0
    %1619 = vmatprep.subr.mxu0 0.0
    %1620 = vmatpush1.xpose.msra.mxu0 0.0
    %1621 = vmatprep.subr.mxu0 0.0
    %1622 = vmatpush1.xpose.msra.mxu0 0.0
    %1623 = vmatprep.mubr.f32.mxu0 0.0
    %1624 = vmatmul.mubr.f32.gmra.mrb[0].mxu0 %v1551
    %v1625 = vpop.f32.mrb[0].mxu0
    %v1626 = vadd.f32 %v947, %v1625
    %v1627 = vpop.f32.mrb[0].mxu0
    %1628 = vmatprep.mubr.f32.mxu0 0.0
    %1629 = vmatmul.mubr.f32.gmra.mrb[0].mxu0 %v1553
    %v1630 = vpop.f32.mrb[0].mxu0
    %v1631 = vadd.f32 %v948, %v1630
    %v1632 = vpop.f32.mrb[0].mxu0
    %1633 = vdwg.mxu0
    %v1634 = vsel %vm1037, %v1626, -inf
    %1635 = vmax.xlane.f32.xlu0 %v1634
    %v1636 = vpop.xlane.xlu0 %1635
    %v1637 = vsel %vm1037, %v1631, -inf
    %1638 = vmax.xlane.f32.xlu0 %v1637
    %v1639 = vpop.xlane.xlu0 %1638
    %v1640 = vsub.f32 %v1626, %v1636
    %v1641 = vsub.f32 %v1631, %v1639
    %v1642 = vmul.f32 %v1640, 1.442695
    %v1643 = vpow.pop %v1642
    %v1644 = vmul.f32 %v1641, 1.442695
    %v1645 = vpow.pop %v1644
    %v1646 = vsel %vm1037, %v1643, 0.0
    %1647 = vadd.xlane.f32.xlu0 %v1646
    %v1648 = vpop.xlane.xlu0 %1647
    %v1649 = vsel %vm1037, %v1645, 0.0
    %1650 = vadd.xlane.f32.xlu0 %v1649
    %v1651 = vpop.xlane.xlu0 %1650
    %v1652 = vrcp.pop %v1648
    %v1653 = vrcp.pop %v1651
    %v1654 = vmul.f32 %v1643, %v1652
    %v1655 = vmul.f32 %v1645, %v1653
    %1656 = vrot.lane.b32.xlu0 %v896, 32
    %v1657 = vpop.permute.xlu0 %1656
    %1658 = vrot.lane.b32.xlu0 %v902, 32
    %v1659 = vpop.permute.xlu0 %1658
    %v1663 = vsel %vm1037, %v1654, 0
    %v1666 = vsel %vm1037, %v1655, 0
    %1668 = vmatprep.subr.mxu0 0.0
    %1669 = vmatpush1.msra.mxu0 %v1657
    %1670 = vmatprep.subr.mxu0 0.0
    %1671 = vmatpush1.msra.mxu0 %v1659
    %1672 = vmatprep.subr.mxu0 0.0
    %1673 = vmatpush1.msra.mxu0 0.0
    %1674 = vmatprep.subr.mxu0 0.0
    %1675 = vmatpush1.msra.mxu0 0.0
    %1676 = vmatprep.subr.mxu0 0.0
    %1677 = vmatpush1.msra.mxu0 0.0
    %1678 = vmatprep.subr.mxu0 0.0
    %1679 = vmatpush1.msra.mxu0 0.0
    %1680 = vmatprep.subr.mxu0 0.0
    %1681 = vmatpush1.msra.mxu0 0.0
    %1682 = vmatprep.subr.mxu0 0.0
    %1683 = vmatpush1.msra.mxu0 0.0
    %1684 = vmatprep.subr.mxu0 0.0
    %1685 = vmatpush1.msra.mxu0 0.0
    %1686 = vmatprep.subr.mxu0 0.0
    %1687 = vmatpush1.msra.mxu0 0.0
    %1688 = vmatprep.subr.mxu0 0.0
    %1689 = vmatpush1.msra.mxu0 0.0
    %1690 = vmatprep.subr.mxu0 0.0
    %1691 = vmatpush1.msra.mxu0 0.0
    %1692 = vmatprep.subr.mxu0 0.0
    %1693 = vmatpush1.msra.mxu0 0.0
    %1694 = vmatprep.subr.mxu0 0.0
    %1695 = vmatpush1.msra.mxu0 0.0
    %1696 = vmatprep.subr.mxu0 0.0
    %1697 = vmatpush1.msra.mxu0 0.0
    %1698 = vmatprep.subr.mxu0 0.0
    %1699 = vmatpush1.msra.mxu0 0.0
    %1700 = vmatprep.subr.mxu0 0.0
    %1701 = vmatpush1.msra.mxu0 0.0
    %1702 = vmatprep.subr.mxu0 0.0
    %1703 = vmatpush1.msra.mxu0 0.0
    %1704 = vmatprep.subr.mxu0 0.0
    %1705 = vmatpush1.msra.mxu0 0.0
    %1706 = vmatprep.subr.mxu0 0.0
    %1707 = vmatpush1.msra.mxu0 0.0
    %1708 = vmatprep.subr.mxu0 0.0
    %1709 = vmatpush1.msra.mxu0 0.0
    %1710 = vmatprep.subr.mxu0 0.0
    %1711 = vmatpush1.msra.mxu0 0.0
    %1712 = vmatprep.subr.mxu0 0.0
    %1713 = vmatpush1.msra.mxu0 0.0
    %1714 = vmatprep.subr.mxu0 0.0
    %1715 = vmatpush1.msra.mxu0 0.0
    %1716 = vmatprep.subr.mxu0 0.0
    %1717 = vmatpush1.msra.mxu0 0.0
    %1718 = vmatprep.subr.mxu0 0.0
    %1719 = vmatpush1.msra.mxu0 0.0
    %1720 = vmatprep.subr.mxu0 0.0
    %1721 = vmatpush1.msra.mxu0 0.0
    %1722 = vmatprep.subr.mxu0 0.0
    %1723 = vmatpush1.msra.mxu0 0.0
    %1724 = vmatprep.subr.mxu0 0.0
    %1725 = vmatpush1.msra.mxu0 0.0
    %1726 = vmatprep.subr.mxu0 0.0
    %1727 = vmatpush1.msra.mxu0 0.0
    %1728 = vmatprep.subr.mxu0 0.0
    %1729 = vmatpush1.msra.mxu0 0.0
    %1730 = vmatprep.subr.mxu0 0.0
    %1731 = vmatpush1.msra.mxu0 0.0
    %1732 = vmatprep.mubr.f32.mxu0 0.0
    %1733 = vmatmul.mubr.f32.gmra.mrb[0].mxu0 %v1663
    %v1734 = vpop.f32.mrb[0].mxu0
    %v1735 = vadd.f32 0.0, %v1734
    %v1736 = vpop.f32.mrb[0].mxu0
    %1737 = vmatprep.mubr.f32.mxu0 0.0
    %1738 = vmatmul.mubr.f32.gmra.mrb[0].mxu0 %v1666
    %v1739 = vpop.f32.mrb[0].mxu0
    %v1740 = vadd.f32 0.0, %v1739
    %v1741 = vpop.f32.mrb[0].mxu0
    %1742 = vdwg.mxu0
    %1745 = vrot.lane.b32.xlu0 %v1335, 32
    %v1746 = vpop.permute.xlu0 %1745
    %1747 = vrot.lane.b32.xlu0 %v1340, 32
    %v1748 = vpop.permute.xlu0 %1747
    %1753 = vrot.lane.b32.xlu0 %v1535, 64
    %v1754 = vpop.permute.xlu0 %1753
    %1755 = vrot.lane.b32.xlu0 %v1540, 64
    %v1756 = vpop.permute.xlu0 %1755
    %1761 = vrot.lane.b32.xlu0 %v1735, 96
    %v1762 = vpop.permute.xlu0 %1761
    %1763 = vrot.lane.b32.xlu0 %v1740, 96
    %v1764 = vpop.permute.xlu0 %1763
    %v1767 = vsel %vm949, %v1133, %v1746
    %v1768 = vsel %vm949, %v1138, %v1748
    %vm1769 = vcmask 523264
    %v1770 = vsel %vm1769, %v1767, %v1754
    %v1771 = vsel %vm1769, %v1768, %v1756
    %vm1772 = vcmask 785408
    %v1773 = vsel %vm1772, %v1770, %v1762
    %v1774 = vsel %vm1772, %v1771, %v1764
    %v1775 = vld [vmem:[#allocation11] sm:$0xff]
    %v1776 = vld [vmem:[#allocation11 + $0x8] sm:$0xff]
    %v1777 = vld [vmem:[#allocation11 + $0x10] sm:$0xff]
    %v1778 = vld [vmem:[#allocation11 + $0x18] sm:$0xff]
    %v1779 = vld [vmem:[#allocation11 + $0x20] sm:$0xff]
    %v1780 = vld [vmem:[#allocation11 + $0x28] sm:$0xff]
    %v1781 = vld [vmem:[#allocation11 + $0x30] sm:$0xff]
    %v1782 = vld [vmem:[#allocation11 + $0x38] sm:$0xff]
    %v1783 = vld [vmem:[#allocation11 + $0x40] sm:$0xff]
    %v1784 = vld [vmem:[#allocation11 + $0x48] sm:$0xff]
    %v1785 = vld [vmem:[#allocation11 + $0x50] sm:$0xff]
    %v1786 = vld [vmem:[#allocation11 + $0x58] sm:$0xff]
    %v1787 = vld [vmem:[#allocation11 + $0x60] sm:$0xff]
    %v1788 = vld [vmem:[#allocation11 + $0x68] sm:$0xff]
    %v1789 = vld [vmem:[#allocation11 + $0x70] sm:$0xff]
    %v1790 = vld [vmem:[#allocation11 + $0x78] sm:$0xff]
    %v1791 = vlaneseq
    %v1792 = vshrl.u32 %v1791, 7
    %v1793 = vsub.s32 1, %v1792
    %v1794 = vrot.slane %v687, %v1793
    %1795 = vmatprep.subr.mxu0 0.0
    %1796 = vmatpush1.msra.mxu0 %v1775
    %1797 = vmatprep.subr.mxu0 0.0
    %1798 = vmatpush1.msra.mxu0 %v1776
    %1799 = vmatprep.subr.mxu0 0.0
    %1800 = vmatpush1.msra.mxu0 %v1777
    %1801 = vmatprep.subr.mxu0 0.0
    %1802 = vmatpush1.msra.mxu0 %v1778
    %1803 = vmatprep.subr.mxu0 0.0
    %1804 = vmatpush1.msra.mxu0 %v1779
    %1805 = vmatprep.subr.mxu0 0.0
    %1806 = vmatpush1.msra.mxu0 %v1780
    %1807 = vmatprep.subr.mxu0 0.0
    %1808 = vmatpush1.msra.mxu0 %v1781
    %1809 = vmatprep.subr.mxu0 0.0
    %1810 = vmatpush1.msra.mxu0 %v1782
    %1811 = vmatprep.subr.mxu0 0.0
    %1812 = vmatpush1.msra.mxu0 %v1783
    %1813 = vmatprep.subr.mxu0 0.0
    %1814 = vmatpush1.msra.mxu0 %v1784
    %1815 = vmatprep.subr.mxu0 0.0
    %1816 = vmatpush1.msra.mxu0 %v1785
    %1817 = vmatprep.subr.mxu0 0.0
    %1818 = vmatpush1.msra.mxu0 %v1786
    %1819 = vmatprep.subr.mxu0 0.0
    %1820 = vmatpush1.msra.mxu0 %v1787
    %1821 = vmatprep.subr.mxu0 0.0
    %1822 = vmatpush1.msra.mxu0 %v1788
    %1823 = vmatprep.subr.mxu0 0.0
    %1824 = vmatpush1.msra.mxu0 %v1789
    %1825 = vmatprep.subr.mxu0 0.0
    %1826 = vmatpush1.msra.mxu0 %v1790
    %1827 = vmatprep.subr.mxu0 0.0
    %1828 = vmatpush1.msra.mxu0 0.0
    %1829 = vmatprep.subr.mxu0 0.0
    %1830 = vmatpush1.msra.mxu0 0.0
    %1831 = vmatprep.subr.mxu0 0.0
    %1832 = vmatpush1.msra.mxu0 0.0
    %1833 = vmatprep.subr.mxu0 0.0
    %1834 = vmatpush1.msra.mxu0 0.0
    %1835 = vmatprep.subr.mxu0 0.0
    %1836 = vmatpush1.msra.mxu0 0.0
    %1837 = vmatprep.subr.mxu0 0.0
    %1838 = vmatpush1.msra.mxu0 0.0
    %1839 = vmatprep.subr.mxu0 0.0
    %1840 = vmatpush1.msra.mxu0 0.0
    %1841 = vmatprep.subr.mxu0 0.0
    %1842 = vmatpush1.msra.mxu0 0.0
    %1843 = vmatprep.subr.mxu0 0.0
    %1844 = vmatpush1.msra.mxu0 0.0
    %1845 = vmatprep.subr.mxu0 0.0
    %1846 = vmatpush1.msra.mxu0 0.0
    %1847 = vmatprep.subr.mxu0 0.0
    %1848 = vmatpush1.msra.mxu0 0.0
    %1849 = vmatprep.subr.mxu0 0.0
    %1850 = vmatpush1.msra.mxu0 0.0
    %1851 = vmatprep.subr.mxu0 0.0
    %1852 = vmatpush1.msra.mxu0 0.0
    %1853 = vmatprep.subr.mxu0 0.0
    %1854 = vmatpush1.msra.mxu0 0.0
    %1855 = vmatprep.subr.mxu0 0.0
    %1856 = vmatpush1.msra.mxu0 0.0
    %1857 = vmatprep.subr.mxu0 0.0
    %1858 = vmatpush1.msra.mxu0 0.0
    %1859 = vmatprep.mubr.f32.mxu0 0.0
    %1860 = vmatmul.mubr.f32.gmra.mrb[0].mxu0 %v1773
    %v1861 = vpop.f32.mrb[0].mxu0
    %v1862 = vadd.f32 %v1794, %v1861
    %v1863 = vpop.f32.mrb[0].mxu0
    %1864 = vmatprep.mubr.f32.mxu0 0.0
    %1865 = vmatmul.mubr.f32.gmra.mrb[0].mxu0 %v1774
    %v1866 = vpop.f32.mrb[0].mxu0
    %v1867 = vadd.f32 %v1794, %v1866
    %v1868 = vpop.f32.mrb[0].mxu0
    %1869 = vdwg.mxu0
    %v1870 = vadd.f32 %v681, %v1862
    %v1871 = vadd.f32 %v682, %v1867
    %1872 = vadd.xlane.f32.xlu0 %v1870
    %v1873 = vpop.xlane.xlu0 %1872
    %1874 = vadd.xlane.f32.xlu0 %v1871
    %v1875 = vpop.xlane.xlu0 %1874
    %v1876 = vrcp.pop 128.0
    %v1877 = vmul.f32 %v1873, %v1876
    %v1878 = vmul.f32 %v1875, %v1876
    %v1879 = vsub.f32 %v1870, %v1877
    %v1880 = vsub.f32 %v1871, %v1878
    %v1881 = vmul.f32 %v1879, %v1879
    %v1882 = vmul.f32 %v1880, %v1880
    %1883 = vadd.xlane.f32.xlu0 %v1881
    %v1884 = vpop.xlane.xlu0 %1883
    %1885 = vadd.xlane.f32.xlu0 %v1882
    %v1886 = vpop.xlane.xlu0 %1885
    %v1887 = vmul.f32 %v1884, %v1876
    %v1888 = vmul.f32 %v1886, %v1876
    %v1889 = vadd.f32 %v1887, 1e-05
    %v1890 = vadd.f32 %v1888, 1e-05
    %v1891 = vrsqrt.pop %v1889
    %v1892 = vrsqrt.pop %v1890
    %v1893 = vmul.f32 %v1879, %v1891
    %v1894 = vmul.f32 %v1880, %v1892
    %v1895 = vlaneseq
    %v1896 = vshrl.u32 %v1895, 7
    %v1897 = vsub.s32 3, %v1896
    %v1898 = vrot.slane %v687, %v1897
    %v1899 = vmul.f32 %v1893, %v1898
    %v1900 = vmul.f32 %v1894, %v1898
    %v1901 = vlaneseq
    %v1902 = vshrl.u32 %v1901, 7
    %v1903 = vsub.s32 4, %v1902
    %v1904 = vrot.slane %v687, %v1903
    %v1905 = vadd.f32 %v1899, %v1904
    %v1906 = vadd.f32 %v1900, %v1904
    %v1907 = vld [vmem:[#allocation13] sm:$0xff]
    %v1908 = vld [vmem:[#allocation13 + $0x8] sm:$0xff]
    %v1909 = vld [vmem:[#allocation13 + $0x10] sm:$0xff]
    %v1910 = vld [vmem:[#allocation13 + $0x18] sm:$0xff]
    %v1911 = vld [vmem:[#allocation13 + $0x20] sm:$0xff]
    %v1912 = vld [vmem:[#allocation13 + $0x28] sm:$0xff]
    %v1913 = vld [vmem:[#allocation13 + $0x30] sm:$0xff]
    %v1914 = vld [vmem:[#allocation13 + $0x38] sm:$0xff]
    %v1915 = vld [vmem:[#allocation13 + $0x40] sm:$0xff]
    %v1916 = vld [vmem:[#allocation13 + $0x48] sm:$0xff]
    %v1917 = vld [vmem:[#allocation13 + $0x50] sm:$0xff]
    %v1918 = vld [vmem:[#allocation13 + $0x58] sm:$0xff]
    %v1919 = vld [vmem:[#allocation13 + $0x60] sm:$0xff]
    %v1920 = vld [vmem:[#allocation13 + $0x68] sm:$0xff]
    %v1921 = vld [vmem:[#allocation13 + $0x70] sm:$0xff]
    %v1922 = vld [vmem:[#allocation13 + $0x78] sm:$0xff]
    %v1923 = vld [vmem:[#allocation13 + $0x80] sm:$0xff]
    %v1924 = vld [vmem:[#allocation13 + $0x88] sm:$0xff]
    %v1925 = vld [vmem:[#allocation13 + $0x90] sm:$0xff]
    %v1926 = vld [vmem:[#allocation13 + $0x98] sm:$0xff]
    %v1927 = vld [vmem:[#allocation13 + $0xa0] sm:$0xff]
    %v1928 = vld [vmem:[#allocation13 + $0xa8] sm:$0xff]
    %v1929 = vld [vmem:[#allocation13 + $0xb0] sm:$0xff]
    %v1930 = vld [vmem:[#allocation13 + $0xb8] sm:$0xff]
    %v1931 = vld [vmem:[#allocation13 + $0xc0] sm:$0xff]
    %v1932 = vld [vmem:[#allocation13 + $0xc8] sm:$0xff]
    %v1933 = vld [vmem:[#allocation13 + $0xd0] sm:$0xff]
    %v1934 = vld [vmem:[#allocation13 + $0xd8] sm:$0xff]
    %v1935 = vld [vmem:[#allocation13 + $0xe0] sm:$0xff]
    %v1936 = vld [vmem:[#allocation13 + $0xe8] sm:$0xff]
    %v1937 = vld [vmem:[#allocation13 + $0xf0] sm:$0xff]
    %v1938 = vld [vmem:[#allocation13 + $0xf8] sm:$0xff]
    %v1939 = vld [vmem:[#allocation14] sm:$0x3]
    %v1941 = vlaneseq
    %v1942 = vshrl.u32 %v1941, 7
    %v1943 = vsub.s32 0, %v1942
    %v1944 = vrot.slane %v1939, %v1943
    %v1945 = vlaneseq
    %v1946 = vshrl.u32 %v1945, 7
    %v1947 = vsub.s32 1, %v1946
    %v1948 = vrot.slane %v1939, %v1947
    %1951 = vmatprep.subr.mxu0 %v1908
    %1952 = vmatpush1.msra.mxu0 %v1907
    %1953 = vmatprep.subr.mxu0 %v1910
    %1954 = vmatpush1.msra.mxu0 %v1909
    %1955 = vmatprep.subr.mxu0 %v1912
    %1956 = vmatpush1.msra.mxu0 %v1911
    %1957 = vmatprep.subr.mxu0 %v1914
    %1958 = vmatpush1.msra.mxu0 %v1913
    %1959 = vmatprep.subr.mxu0 %v1916
    %1960 = vmatpush1.msra.mxu0 %v1915
    %1961 = vmatprep.subr.mxu0 %v1918
    %1962 = vmatpush1.msra.mxu0 %v1917
    %1963 = vmatprep.subr.mxu0 %v1920
    %1964 = vmatpush1.msra.mxu0 %v1919
    %1965 = vmatprep.subr.mxu0 %v1922
    %1966 = vmatpush1.msra.mxu0 %v1921
    %1967 = vmatprep.subr.mxu0 %v1924
    %1968 = vmatpush1.msra.mxu0 %v1923
    %1969 = vmatprep.subr.mxu0 %v1926
    %1970 = vmatpush1.msra.mxu0 %v1925
    %1971 = vmatprep.subr.mxu0 %v1928
    %1972 = vmatpush1.msra.mxu0 %v1927
    %1973 = vmatprep.subr.mxu0 %v1930
    %1974 = vmatpush1.msra.mxu0 %v1929
    %1975 = vmatprep.subr.mxu0 %v1932
    %1976 = vmatpush1.msra.mxu0 %v1931
    %1977 = vmatprep.subr.mxu0 %v1934
    %1978 = vmatpush1.msra.mxu0 %v1933
    %1979 = vmatprep.subr.mxu0 %v1936
    %1980 = vmatpush1.msra.mxu0 %v1935
    %1981 = vmatprep.subr.mxu0 %v1938
    %1982 = vmatpush1.msra.mxu0 %v1937
    %1983 = vmatprep.subr.mxu0 0.0
    %1984 = vmatpush1.msra.mxu0 0.0
    %1985 = vmatprep.subr.mxu0 0.0
    %1986 = vmatpush1.msra.mxu0 0.0
    %1987 = vmatprep.subr.mxu0 0.0
    %1988 = vmatpush1.msra.mxu0 0.0
    %1989 = vmatprep.subr.mxu0 0.0
    %1990 = vmatpush1.msra.mxu0 0.0
    %1991 = vmatprep.subr.mxu0 0.0
    %1992 = vmatpush1.msra.mxu0 0.0
    %1993 = vmatprep.subr.mxu0 0.0
    %1994 = vmatpush1.msra.mxu0 0.0
    %1995 = vmatprep.subr.mxu0 0.0
    %1996 = vmatpush1.msra.mxu0 0.0
    %1997 = vmatprep.subr.mxu0 0.0
    %1998 = vmatpush1.msra.mxu0 0.0
    %1999 = vmatprep.subr.mxu0 0.0
    %2000 = vmatpush1.msra.mxu0 0.0
    %2001 = vmatprep.subr.mxu0 0.0
    %2002 = vmatpush1.msra.mxu0 0.0
    %2003 = vmatprep.subr.mxu0 0.0
    %2004 = vmatpush1.msra.mxu0 0.0
    %2005 = vmatprep.subr.mxu0 0.0
    %2006 = vmatpush1.msra.mxu0 0.0
    %2007 = vmatprep.subr.mxu0 0.0
    %2008 = vmatpush1.msra.mxu0 0.0
    %2009 = vmatprep.subr.mxu0 0.0
    %2010 = vmatpush1.msra.mxu0 0.0
    %2011 = vmatprep.subr.mxu0 0.0
    %2012 = vmatpush1.msra.mxu0 0.0
    %2013 = vmatprep.subr.mxu0 0.0
    %2014 = vmatpush1.msra.mxu0 0.0
    %2015 = vmatprep.mubr.f32.mxu0 0.0
    %2016 = vmatmul.mubr.f32.gmra.mrb[0].mxu0 %v1905
    %v2017 = vpop.f32.mrb[0].mxu0
    %v2018 = vadd.f32 %v1944, %v2017
    %v2019 = vpop.f32.mrb[0].mxu0
    %v2020 = vadd.f32 %v1948, %v2019
    %2021 = vmatprep.mubr.f32.mxu0 0.0
    %2022 = vmatmul.mubr.f32.gmra.mrb[0].mxu0 %v1906
    %v2023 = vpop.f32.mrb[0].mxu0
    %v2024 = vadd.f32 %v1944, %v2023
    %v2025 = vpop.f32.mrb[0].mxu0
    %v2026 = vadd.f32 %v1948, %v2025
    %2027 = vdwg.mxu0
    %v2028 = vmax.f32 %v2018, 0.0
    %v2029 = vmax.f32 %v2020, 0.0
    %v2030 = vmax.f32 %v2024, 0.0
    %v2031 = vmax.f32 %v2026, 0.0
    %v2032 = vld [vmem:[#allocation16] sm:$0xff]
    %v2033 = vld [vmem:[#allocation16 + $0x8] sm:$0xff]
    %v2034 = vld [vmem:[#allocation16 + $0x10] sm:$0xff]
    %v2035 = vld [vmem:[#allocation16 + $0x18] sm:$0xff]
    %v2036 = vld [vmem:[#allocation16 + $0x20] sm:$0xff]
    %v2037 = vld [vmem:[#allocation16 + $0x28] sm:$0xff]
    %v2038 = vld [vmem:[#allocation16 + $0x30] sm:$0xff]
    %v2039 = vld [vmem:[#allocation16 + $0x38] sm:$0xff]
    %v2040 = vld [vmem:[#allocation16 + $0x40] sm:$0xff]
    %v2041 = vld [vmem:[#allocation16 + $0x48] sm:$0xff]
    %v2042 = vld [vmem:[#allocation16 + $0x50] sm:$0xff]
    %v2043 = vld [vmem:[#allocation16 + $0x58] sm:$0xff]
    %v2044 = vld [vmem:[#allocation16 + $0x60] sm:$0xff]
    %v2045 = vld [vmem:[#allocation16 + $0x68] sm:$0xff]
    %v2046 = vld [vmem:[#allocation16 + $0x70] sm:$0xff]
    %v2047 = vld [vmem:[#allocation16 + $0x78] sm:$0xff]
    %v2048 = vld [vmem:[#allocation16 + $0x80] sm:$0xff]
    %v2049 = vld [vmem:[#allocation16 + $0x88] sm:$0xff]
    %v2050 = vld [vmem:[#allocation16 + $0x90] sm:$0xff]
    %v2051 = vld [vmem:[#allocation16 + $0x98] sm:$0xff]
    %v2052 = vld [vmem:[#allocation16 + $0xa0] sm:$0xff]
    %v2053 = vld [vmem:[#allocation16 + $0xa8] sm:$0xff]
    %v2054 = vld [vmem:[#allocation16 + $0xb0] sm:$0xff]
    %v2055 = vld [vmem:[#allocation16 + $0xb8] sm:$0xff]
    %v2056 = vld [vmem:[#allocation16 + $0xc0] sm:$0xff]
    %v2057 = vld [vmem:[#allocation16 + $0xc8] sm:$0xff]
    %v2058 = vld [vmem:[#allocation16 + $0xd0] sm:$0xff]
    %v2059 = vld [vmem:[#allocation16 + $0xd8] sm:$0xff]
    %v2060 = vld [vmem:[#allocation16 + $0xe0] sm:$0xff]
    %v2061 = vld [vmem:[#allocation16 + $0xe8] sm:$0xff]
    %v2062 = vld [vmem:[#allocation16 + $0xf0] sm:$0xff]
    %v2063 = vld [vmem:[#allocation16 + $0xf8] sm:$0xff]
    %v2064 = vlaneseq
    %v2065 = vshrl.u32 %v2064, 7
    %v2066 = vsub.s32 2, %v2065
    %v2067 = vrot.slane %v687, %v2066
    %2068 = vmatprep.subr.mxu0 0.0
    %2069 = vmatpush1.msra.mxu0 %v2032
    %2070 = vmatprep.subr.mxu0 0.0
    %2071 = vmatpush1.msra.mxu0 %v2033
    %2072 = vmatprep.subr.mxu0 0.0
    %2073 = vmatpush1.msra.mxu0 %v2034
    %2074 = vmatprep.subr.mxu0 0.0
    %2075 = vmatpush1.msra.mxu0 %v2035
    %2076 = vmatprep.subr.mxu0 0.0
    %2077 = vmatpush1.msra.mxu0 %v2036
    %2078 = vmatprep.subr.mxu0 0.0
    %2079 = vmatpush1.msra.mxu0 %v2037
    %2080 = vmatprep.subr.mxu0 0.0
    %2081 = vmatpush1.msra.mxu0 %v2038
    %2082 = vmatprep.subr.mxu0 0.0
    %2083 = vmatpush1.msra.mxu0 %v2039
    %2084 = vmatprep.subr.mxu0 0.0
    %2085 = vmatpush1.msra.mxu0 %v2040
    %2086 = vmatprep.subr.mxu0 0.0
    %2087 = vmatpush1.msra.mxu0 %v2041
    %2088 = vmatprep.subr.mxu0 0.0
    %2089 = vmatpush1.msra.mxu0 %v2042
    %2090 = vmatprep.subr.mxu0 0.0
    %2091 = vmatpush1.msra.mxu0 %v2043
    %2092 = vmatprep.subr.mxu0 0.0
    %2093 = vmatpush1.msra.mxu0 %v2044
    %2094 = vmatprep.subr.mxu0 0.0
    %2095 = vmatpush1.msra.mxu0 %v2045
    %2096 = vmatprep.subr.mxu0 0.0
    %2097 = vmatpush1.msra.mxu0 %v2046
    %2098 = vmatprep.subr.mxu0 0.0
    %2099 = vmatpush1.msra.mxu0 %v2047
    %2100 = vmatprep.subr.mxu0 0.0
    %2101 = vmatpush1.msra.mxu0 %v2048
    %2102 = vmatprep.subr.mxu0 0.0
    %2103 = vmatpush1.msra.mxu0 %v2049
    %2104 = vmatprep.subr.mxu0 0.0
    %2105 = vmatpush1.msra.mxu0 %v2050
    %2106 = vmatprep.subr.mxu0 0.0
    %2107 = vmatpush1.msra.mxu0 %v2051
    %2108 = vmatprep.subr.mxu0 0.0
    %2109 = vmatpush1.msra.mxu0 %v2052
    %2110 = vmatprep.subr.mxu0 0.0
    %2111 = vmatpush1.msra.mxu0 %v2053
    %2112 = vmatprep.subr.mxu0 0.0
    %2113 = vmatpush1.msra.mxu0 %v2054
    %2114 = vmatprep.subr.mxu0 0.0
    %2115 = vmatpush1.msra.mxu0 %v2055
    %2116 = vmatprep.subr.mxu0 0.0
    %2117 = vmatpush1.msra.mxu0 %v2056
    %2118 = vmatprep.subr.mxu0 0.0
    %2119 = vmatpush1.msra.mxu0 %v2057
    %2120 = vmatprep.subr.mxu0 0.0
    %2121 = vmatpush1.msra.mxu0 %v2058
    %2122 = vmatprep.subr.mxu0 0.0
    %2123 = vmatpush1.msra.mxu0 %v2059
    %2124 = vmatprep.subr.mxu0 0.0
    %2125 = vmatpush1.msra.mxu0 %v2060
    %2126 = vmatprep.subr.mxu0 0.0
    %2127 = vmatpush1.msra.mxu0 %v2061
    %2128 = vmatprep.subr.mxu0 0.0
    %2129 = vmatpush1.msra.mxu0 %v2062
    %2130 = vmatprep.subr.mxu0 0.0
    %2131 = vmatpush1.msra.mxu0 %v2063
    %2132 = vmatprep.mubr.f32.mxu0 %v2029
    %2133 = vmatmul.mubr.f32.gmra.mrb[0].mxu0 %v2028
    %v2134 = vpop.f32.mrb[0].mxu0
    %v2135 = vadd.f32 %v2067, %v2134
    %v2136 = vpop.f32.mrb[0].mxu0
    %2137 = vmatprep.mubr.f32.mxu0 %v2031
    %2138 = vmatmul.mubr.f32.gmra.mrb[0].mxu0 %v2030
    %v2139 = vpop.f32.mrb[0].mxu0
    %v2140 = vadd.f32 %v2067, %v2139
    %v2141 = vpop.f32.mrb[0].mxu0
    %2142 = vdwg.mxu0
    %v2143 = vadd.f32 %v1905, %v2135
    %v2144 = vadd.f32 %v1906, %v2140
    %2145 = vadd.xlane.f32.xlu0 %v2143
    %v2146 = vpop.xlane.xlu0 %2145
    %2147 = vadd.xlane.f32.xlu0 %v2144
    %v2148 = vpop.xlane.xlu0 %2147
    %v2149 = vmul.f32 %v2146, %v1876
    %v2150 = vmul.f32 %v2148, %v1876
    %v2151 = vsub.f32 %v2143, %v2149
    %v2152 = vsub.f32 %v2144, %v2150
    %v2153 = vmul.f32 %v2151, %v2151
    %v2154 = vmul.f32 %v2152, %v2152
    %2155 = vadd.xlane.f32.xlu0 %v2153
    %v2156 = vpop.xlane.xlu0 %2155
    %2157 = vadd.xlane.f32.xlu0 %v2154
    %v2158 = vpop.xlane.xlu0 %2157
    %v2159 = vmul.f32 %v2156, %v1876
    %v2160 = vmul.f32 %v2158, %v1876
    %v2161 = vadd.f32 %v2159, 1e-05
    %v2162 = vadd.f32 %v2160, 1e-05
    %v2163 = vrsqrt.pop %v2161
    %v2164 = vrsqrt.pop %v2162
    %v2165 = vmul.f32 %v2151, %v2163
    %v2166 = vmul.f32 %v2152, %v2164
    %v2167 = vlaneseq
    %v2168 = vshrl.u32 %v2167, 7
    %v2169 = vsub.s32 5, %v2168
    %v2170 = vrot.slane %v687, %v2169
    %v2171 = vmul.f32 %v2165, %v2170
    %v2172 = vmul.f32 %v2166, %v2170
    %v2173 = vlaneseq
    %v2174 = vshrl.u32 %v2173, 7
    %v2175 = vsub.s32 6, %v2174
    %v2176 = vrot.slane %v687, %v2175
    %v2177 = vadd.f32 %v2171, %v2176
    %v2178 = vadd.f32 %v2172, %v2176
    %2179 = vst [vmem:[#allocation17] sm:$0xff] %v2177
    %2180 = vst [vmem:[#allocation17 + $0x8] sm:$0xff] %v2178
    // Predicated region
    $region90: #{cross_attn_layer_pallas.1} parent=1 // pred_check
      _
    $region91: #{cross_attn_layer_pallas.1} parent=1 // pred_check_branch
      %2182 = sbr.rel (0) target = $region93
    $region92: #{cross_attn_layer_pallas.1} parent=1 // pred_region
      %s2184 = ssub.s32 256, 256
      %2185 = vsyncadd [#allocation4], %s2184
      %s2186 = sshll.u32 [#allocation17], 4
      %s2187 = int_to_ptr.vmem [resolvable:$true] %s2186
      %2192 = dma.vmem_to_hbm [thread:$0]  %s2187, 256, %s13, [#allocation4], 128, 128, 8
    $region93: #{cross_attn_layer_pallas.1} parent=1 // pred_fallthru
      _
    // Predicated region
    $region94: #{cross_attn_layer_pallas.1} parent=1 // pred_check
      _
    $region95: #{cross_attn_layer_pallas.1} parent=1 // pred_check_branch
      %2194 = sbr.rel (0) target = $region97
    $region96: #{cross_attn_layer_pallas.1} parent=1 // pred_region
      %2195 = dma.done [#allocation4], 256
    $region97: #{cross_attn_layer_pallas.1} parent=1 // pred_fallthru
      _
    %2196 = vsyncpa [#allocation3], 1
    %2197 = vsyncpa [#allocation6], 1
    %2198 = vsyncpa [#allocation9], 1
    %2199 = vsyncpa [#allocation12], 1
    %2200 = vsyncpa [#allocation15], 1
    %2201 = vsyncpa [#allocation4], 1

</llo_original>
